<compile_context>
chip_gen: v5e
topology: v5e:2x2
jax: 0.10.0
libtpu: 0.0.40
codegen_flags: <defaults>
</compile_context>

<pallas_src>
import jax
import jax.numpy as jnp
from jax import lax
from jax.experimental import pallas as pl
from jax.experimental.pallas import tpu as pltpu


def lstm_kernel(x_ref, len_ref, wih_ref, whh_ref, b_ref, out_ref, gx_sc):
    # x_ref:   (T*bb, D)   time-major flattened block: row t*bb + b == x[b, t]
    # len_ref: (bb, 1)     int32 valid lengths per (padded) batch row
    # wih_ref: (D, 4D)     W_ih^T
    # whh_ref: (D, 4D)     W_hh^T
    # b_ref:   (1, 4D)     b_ih + b_hh
    # out_ref: (bb, D)     last valid hidden state per batch row
    # gx_sc:   (T*bb, 4D)  f32 scratch: hoisted input projection
    B, D = out_ref.shape
    TB = gx_sc.shape[0]
    T = TB // B

    # --- prologue: hoist the input projection out of the recurrence ---------
    # One big MXU matmul (+ one bias add) for ALL timesteps of this block,
    # instead of T tiny latency-bound matmuls on the serial chain.
    gx_sc[...] = (
        jnp.dot(x_ref[...], wih_ref[...], preferred_element_type=jnp.float32)
        + b_ref[...]
    )

    lengths = len_ref[...]          # (bb, 1) int32, tiny

    def step(t, carry):
        h, c = carry
        off = pl.multiple_of(t * B, B)            # sublane-aligned (B % 8 == 0)
        # Recurrent matmul: RHS streamed from VMEM into the MXU each step, not
        # held as a loop-spanning 256 KB value in vregs.
        gates = gx_sc[pl.ds(off, B), :] + jnp.dot(
            h, whh_ref[...], preferred_element_type=jnp.float32)   # (bb, 4D)

        # PyTorch gate order [i | f | g | o]
        i_g = jax.nn.sigmoid(gates[:, 0 * D:1 * D])
        f_g = jax.nn.sigmoid(gates[:, 1 * D:2 * D])
        g_g = jnp.tanh(gates[:, 2 * D:3 * D])
        o_g = jax.nn.sigmoid(gates[:, 3 * D:4 * D])

        c_new = f_g * c + i_g * g_g
        h_new = o_g * jnp.tanh(c_new)

        # Only h needs freezing once a row expires (valid is monotone per row
        # and c is never read after expiry) -> carry c_new unconditionally.
        h = jnp.where(lengths > t, h_new, h)
        return h, c_new

    h0 = jnp.zeros((B, D), jnp.float32)
    c0 = jnp.zeros((B, D), jnp.float32)
    h, _ = lax.fori_loop(0, T, step, (h0, c0), unroll=min(T, 8))

    out_ref[...] = h.astype(out_ref.dtype)        # lane-dense (bb, 128*k) store


def lstm_last_hidden(x, mask, w_ih, w_hh, b_ih, b_hh, prologue_dtype=None):
    """x: (B, T, D) batch-first (PyTorch convention), mask: (B, T) {0,1}.

    prologue_dtype: optionally jnp.bfloat16 on v6e/v7x to halve x/W_ih DMA for
    the hoisted input projection (recurrent path stays f32).
    """
    B, T, D = x.shape
    nb = 1 if B < 16 else 2            # batch blocks; 2 -> one per TC on v7x
    blk = 8 * nb
    B_pad = ((B + blk - 1) // blk) * blk
    bb = B_pad // nb                   # rows per block, multiple of 8

    lengths = jnp.sum(mask.astype(jnp.int32), axis=1)               # (B,)
    lengths_p = jnp.zeros((B_pad,), jnp.int32).at[:B].set(lengths)  # pad rows: len 0
    lengths_p = lengths_p.reshape(nb, bb, 1)

    # One fused pad + (per-block) time-major transpose pass; final reshape free.
    x_p = jnp.pad(x, ((0, B_pad - B), (0, 0), (0, 0)))              # (B_pad, T, D)
    x_blk = jnp.transpose(x_p.reshape(nb, bb, T, D), (0, 2, 1, 3))  # (nb, T, bb, D)
    x_blk = x_blk.reshape(nb, T * bb, D)

    wih_t = w_ih.T                                 # (D, 4D)
    whh_t = w_hh.T                                 # (D, 4D) -- stays f32 always
    bias = (b_ih + b_hh).reshape(1, 4 * D)         # (1, 4D)

    if prologue_dtype is not None:
        x_blk = x_blk.astype(prologue_dtype)
        wih_t = wih_t.astype(prologue_dtype)

    itemsize = jnp.dtype(x_blk.dtype).itemsize
    est = (2 * T * bb * D * itemsize               # x block (double-buffered)
           + T * bb * 4 * D * 4                    # gx scratch (f32)
           + 2 * D * 4 * D * (itemsize + 4)        # W_ih^T + W_hh^T
           + 4 * bb * D * 4)                       # out / h / c
    vmem_limit = int(min(max(2 * est, 32 << 20), 64 << 20))

    out = pl.pallas_call(
        lstm_kernel,
        out_shape=jax.ShapeDtypeStruct((B_pad, D), x.dtype),
        grid_spec=pltpu.PrefetchScalarGridSpec(
            num_scalar_prefetch=0,
            grid=(nb,),                                              # batch blocks
            in_specs=[
                pl.BlockSpec((None, T * bb, D), lambda b: (b, 0, 0)),  # x (time-major)
                pl.BlockSpec((None, bb, 1), lambda b: (b, 0, 0)),      # lengths
                pl.BlockSpec((D, 4 * D), lambda b: (0, 0)),            # W_ih^T
                pl.BlockSpec((D, 4 * D), lambda b: (0, 0)),            # W_hh^T
                pl.BlockSpec((1, 4 * D), lambda b: (0, 0)),            # bias
            ],
            out_specs=pl.BlockSpec((bb, D), lambda b: (b, 0)),
            scratch_shapes=[
                pltpu.VMEM((T * bb, 4 * D), jnp.float32),              # hoisted X-proj
            ],
        ),
        compiler_params=pltpu.CompilerParams(
            dimension_semantics=("parallel",),     # independent batch blocks
            vmem_limit_bytes=vmem_limit,
        ),
    )(x_blk, lengths_p, wih_t, whh_t, bias)

    return out[:B]


def lstm_reference(x, mask, w_ih, w_hh, b_ih, b_hh):
    """Pure-JAX reference of the same semantics (masked-carry LSTM)."""
    B, T, D = x.shape
    lengths = jnp.sum(mask.astype(jnp.int32), axis=1)
    step_mask = (jnp.arange(T)[:, None] < lengths[None, :]).astype(x.dtype)  # (T, B)

    def step(carry, inp):
        h, c = carry
        x_t, m_t = inp
        gates = x_t @ w_ih.T + h @ w_hh.T + b_ih + b_hh
        i_g = jax.nn.sigmoid(gates[:, :D])
        f_g = jax.nn.sigmoid(gates[:, D:2 * D])
        g_g = jnp.tanh(gates[:, 2 * D:3 * D])
        o_g = jax.nn.sigmoid(gates[:, 3 * D:])
        c_new = f_g * c + i_g * g_g
        h_new = o_g * jnp.tanh(c_new)
        m = m_t[:, None]
        return (m * h_new + (1 - m) * h, m * c_new + (1 - m) * c), None

    init = (jnp.zeros((B, D), x.dtype), jnp.zeros((B, D), x.dtype))
    (h, _), _ = jax.lax.scan(step, init, (jnp.transpose(x, (1, 0, 2)), step_mask))
    return h


if __name__ == "__main__":
    key = jax.random.PRNGKey(0)
    B, T, D = 4, 6, 128  # batch, seq len, lstm_news_dim (hidden dim == input dim)

    k1, k2, k3, k4, k5 = jax.random.split(key, 5)
    bound = 1.0 / (D ** 0.5)  # PyTorch default LSTM init: U(-1/sqrt(H), 1/sqrt(H))
    w_ih = jax.random.uniform(k1, (4 * D, D), jnp.float32, -bound, bound)
    w_hh = jax.random.uniform(k2, (4 * D, D), jnp.float32, -bound, bound)
    b_ih = jax.random.uniform(k3, (4 * D,), jnp.float32, -bound, bound)
    b_hh = jax.random.uniform(k4, (4 * D,), jnp.float32, -bound, bound)

    x = jax.random.normal(k5, (B, T, D), jnp.float32)
    lengths = jnp.array([6, 3, 1, 5], dtype=jnp.int32)
    mask = (jnp.arange(T)[None, :] < lengths[:, None]).astype(jnp.float32)  # (B, T)

    out = jax.block_until_ready(lstm_last_hidden(x, mask, w_ih, w_hh, b_ih, b_hh))
    ref = lstm_reference(x, mask, w_ih, w_hh, b_ih, b_hh)
    assert out.shape == (B, D), out.shape
    assert jnp.allclose(out, ref, atol=1e-4, rtol=1e-4), float(jnp.abs(out - ref).max())

    # Second config exercises the 2-block "parallel" batch grid (v7x megacore path).
    B2, T2 = 20, 5
    k6 = jax.random.fold_in(k5, 1)
    x2 = jax.random.normal(k6, (B2, T2, D), jnp.float32)
    lengths2 = (jnp.arange(B2, dtype=jnp.int32) % T2) + 1
    mask2 = (jnp.arange(T2)[None, :] < lengths2[:, None]).astype(jnp.float32)
    out2 = jax.block_until_ready(lstm_last_hidden(x2, mask2, w_ih, w_hh, b_ih, b_hh))
    ref2 = lstm_reference(x2, mask2, w_ih, w_hh, b_ih, b_hh)
    assert out2.shape == (B2, D), out2.shape
    assert jnp.allclose(out2, ref2, atol=1e-4, rtol=1e-4), float(jnp.abs(out2 - ref2).max())

    print("KERNEL_OK")
</pallas_src>

<mosaic_0001>
module attributes {stable_mosaic.version = 11 : i64} {
  func.func @lstm_kernel(%arg0: i32, %arg1: memref<1x48x128xf32, #tpu.memory_space<vmem>>, %arg2: memref<1x8x1xi32, #tpu.memory_space<vmem>>, %arg3: memref<128x512xf32, #tpu.memory_space<vmem>>, %arg4: memref<128x512xf32, #tpu.memory_space<vmem>>, %arg5: memref<1x512xf32, #tpu.memory_space<vmem>>, %arg6: memref<8x128xf32, #tpu.memory_space<vmem>>, %arg7: memref<48x512xf32, #tpu.memory_space<vmem>>) attributes {dimension_semantics = [#tpu.dimension_semantics<parallel>], iteration_bounds = array<i64: 1>, scalar_prefetch = 0 : i64, scratch_operands = 1 : i64, tpu.core_type = #tpu.core_type<tc>, window_params = [{transform_indices = @transform_0, window_bounds = array<i64: 1, 48, 128>}, {transform_indices = @transform_1, window_bounds = array<i64: 1, 8, 1>}, {pipeline_mode = #tpu.pipeline_mode<synchronous>, transform_indices = @transform_2, window_bounds = array<i64: 128, 512>}, {pipeline_mode = #tpu.pipeline_mode<synchronous>, transform_indices = @transform_3, window_bounds = array<i64: 128, 512>}, {pipeline_mode = #tpu.pipeline_mode<synchronous>, transform_indices = @transform_4, window_bounds = array<i64: 1, 512>}, {transform_indices = @transform_5, window_bounds = array<i64: 8, 128>}]} {
    %c0 = arith.constant 0 : index
    %c0_0 = arith.constant 0 : index
    %c0_1 = arith.constant 0 : index
    %0 = vector.load %arg1[%c0, %c0_0, %c0_1] : memref<1x48x128xf32, #tpu.memory_space<vmem>>, vector<1x48x128xf32>
    %1 = vector.shape_cast %0 : vector<1x48x128xf32> to vector<48x128xf32>
    %c0_2 = arith.constant 0 : index
    %c0_3 = arith.constant 0 : index
    %2 = vector.load %arg3[%c0_2, %c0_3] : memref<128x512xf32, #tpu.memory_space<vmem>>, vector<128x512xf32>
    %cst = arith.constant dense<0.000000e+00> : vector<48x512xf32>
    %3 = tpu.matmul %1, %2, %cst {dimension_numbers = #tpu.dot_dimension_numbers<[1], [0], [0], [1], [0, 0, 1, 1], [], []>} : vector<48x128xf32>, vector<128x512xf32>, vector<48x512xf32> -> vector<48x512xf32>
    %c0_4 = arith.constant 0 : index
    %c0_5 = arith.constant 0 : index
    %4 = vector.load %arg5[%c0_4, %c0_5] : memref<1x512xf32, #tpu.memory_space<vmem>>, vector<1x512xf32>
    %5 = vector.broadcast %4 : vector<1x512xf32> to vector<48x512xf32>
    %6 = arith.addf %3, %5 : vector<48x512xf32>
    %c0_6 = arith.constant 0 : index
    %c0_7 = arith.constant 0 : index
    %7 = vector.load %arg7[%c0_6, %c0_7] : memref<48x512xf32, #tpu.memory_space<vmem>>, vector<48x512xf32>
    tpu.vector_store %arg7[%c0_6, %c0_7], %6 {strides = array<i32>} : memref<48x512xf32, #tpu.memory_space<vmem>>, vector<48x512xf32>,
    %c0_8 = arith.constant 0 : index
    %c0_9 = arith.constant 0 : index
    %c0_10 = arith.constant 0 : index
    %8 = vector.load %arg2[%c0_8, %c0_9, %c0_10] : memref<1x8x1xi32, #tpu.memory_space<vmem>>, vector<1x8x1xi32>
    %9 = vector.shape_cast %8 : vector<1x8x1xi32> to vector<8x1xi32>
    %cst_11 = arith.constant 0.000000e+00 : f32
    %10 = vector.broadcast %cst_11 : f32 to vector<8x128xf32>
    %cst_12 = arith.constant 0.000000e+00 : f32
    %11 = vector.broadcast %cst_12 : f32 to vector<8x128xf32>
    %c0_i32 = arith.constant 0 : i32
    %c8_i32 = arith.constant 8 : i32
    %12 = arith.muli %c0_i32, %c8_i32 : i32
    %13 = tpu.assume_multiple %12, 8 : i32
    %14 = arith.index_cast %13 : i32 to index
    %c0_13 = arith.constant 0 : index
    %15 = vector.load %arg7[%14, %c0_13] : memref<48x512xf32, #tpu.memory_space<vmem>>, vector<8x512xf32>
    %c0_14 = arith.constant 0 : index
    %c0_15 = arith.constant 0 : index
    %16 = vector.load %arg4[%c0_14, %c0_15] : memref<128x512xf32, #tpu.memory_space<vmem>>, vector<128x512xf32>
    %cst_16 = arith.constant dense<0.000000e+00> : vector<8x512xf32>
    %17 = tpu.matmul %10, %16, %cst_16 {dimension_numbers = #tpu.dot_dimension_numbers<[1], [0], [0], [1], [0, 0, 1, 1], [], []>} : vector<8x128xf32>, vector<128x512xf32>, vector<8x512xf32> -> vector<8x512xf32>
    %18 = arith.addf %15, %17 : vector<8x512xf32>
    %19 = vector.extract_strided_slice %18 {offsets = [0, 0], sizes = [8, 128], strides = [1, 1]} : vector<8x512xf32> to vector<8x128xf32>
    %20 = arith.negf %19 : vector<8x128xf32>
    %21 = math.exp %20 : vector<8x128xf32>
    %cst_17 = arith.constant 1.000000e+00 : f32
    %22 = vector.broadcast %cst_17 : f32 to vector<8x128xf32>
    %23 = arith.addf %22, %21 : vector<8x128xf32>
    %24 = arith.divf %22, %23 : vector<8x128xf32>
    %25 = vector.extract_strided_slice %18 {offsets = [0, 128], sizes = [8, 128], strides = [1, 1]} : vector<8x512xf32> to vector<8x128xf32>
    %26 = arith.negf %25 : vector<8x128xf32>
    %27 = math.exp %26 : vector<8x128xf32>
    %cst_18 = arith.constant 1.000000e+00 : f32
    %28 = vector.broadcast %cst_18 : f32 to vector<8x128xf32>
    %29 = arith.addf %28, %27 : vector<8x128xf32>
    %30 = arith.divf %28, %29 : vector<8x128xf32>
    %31 = vector.extract_strided_slice %18 {offsets = [0, 256], sizes = [8, 128], strides = [1, 1]} : vector<8x512xf32> to vector<8x128xf32>
    %32 = math.tanh %31 : vector<8x128xf32>
    %33 = vector.extract_strided_slice %18 {offsets = [0, 384], sizes = [8, 128], strides = [1, 1]} : vector<8x512xf32> to vector<8x128xf32>
    %34 = arith.negf %33 : vector<8x128xf32>
    %35 = math.exp %34 : vector<8x128xf32>
    %cst_19 = arith.constant 1.000000e+00 : f32
    %36 = vector.broadcast %cst_19 : f32 to vector<8x128xf32>
    %37 = arith.addf %36, %35 : vector<8x128xf32>
    %38 = arith.divf %36, %37 : vector<8x128xf32>
    %39 = arith.mulf %30, %11 : vector<8x128xf32>
    %40 = arith.mulf %24, %32 : vector<8x128xf32>
    %41 = arith.addf %39, %40 : vector<8x128xf32>
    %42 = math.tanh %41 : vector<8x128xf32>
    %43 = arith.mulf %38, %42 : vector<8x128xf32>
    %44 = vector.broadcast %c0_i32 : i32 to vector<8x1xi32>
    %45 = arith.cmpi sgt, %9, %44 : vector<8x1xi32>
    %46 = vector.shape_cast %45 : vector<8x1xi1> to vector<8x1xi1>
    %47 = vector.broadcast %46 : vector<8x1xi1> to vector<8x128xi1>
    %48 = arith.select %47, %43, %10 : vector<8x128xi1>, vector<8x128xf32>
    %c1_i32 = arith.constant 1 : i32
    %c8_i32_20 = arith.constant 8 : i32
    %49 = arith.muli %c1_i32, %c8_i32_20 : i32
    %50 = tpu.assume_multiple %49, 8 : i32
    %51 = arith.index_cast %50 : i32 to index
    %c0_21 = arith.constant 0 : index
    %52 = vector.load %arg7[%51, %c0_21] : memref<48x512xf32, #tpu.memory_space<vmem>>, vector<8x512xf32>
    %c0_22 = arith.constant 0 : index
    %c0_23 = arith.constant 0 : index
    %53 = vector.load %arg4[%c0_22, %c0_23] : memref<128x512xf32, #tpu.memory_space<vmem>>, vector<128x512xf32>
    %cst_24 = arith.constant dense<0.000000e+00> : vector<8x512xf32>
    %54 = tpu.matmul %48, %53, %cst_24 {dimension_numbers = #tpu.dot_dimension_numbers<[1], [0], [0], [1], [0, 0, 1, 1], [], []>} : vector<8x128xf32>, vector<128x512xf32>, vector<8x512xf32> -> vector<8x512xf32>
    %55 = arith.addf %52, %54 : vector<8x512xf32>
    %56 = vector.extract_strided_slice %55 {offsets = [0, 0], sizes = [8, 128], strides = [1, 1]} : vector<8x512xf32> to vector<8x128xf32>
    %57 = arith.negf %56 : vector<8x128xf32>
    %58 = math.exp %57 : vector<8x128xf32>
    %cst_25 = arith.constant 1.000000e+00 : f32
    %59 = vector.broadcast %cst_25 : f32 to vector<8x128xf32>
    %60 = arith.addf %59, %58 : vector<8x128xf32>
    %61 = arith.divf %59, %60 : vector<8x128xf32>
    %62 = vector.extract_strided_slice %55 {offsets = [0, 128], sizes = [8, 128], strides = [1, 1]} : vector<8x512xf32> to vector<8x128xf32>
    %63 = arith.negf %62 : vector<8x128xf32>
    %64 = math.exp %63 : vector<8x128xf32>
    %cst_26 = arith.constant 1.000000e+00 : f32
    %65 = vector.broadcast %cst_26 : f32 to vector<8x128xf32>
    %66 = arith.addf %65, %64 : vector<8x128xf32>
    %67 = arith.divf %65, %66 : vector<8x128xf32>
    %68 = vector.extract_strided_slice %55 {offsets = [0, 256], sizes = [8, 128], strides = [1, 1]} : vector<8x512xf32> to vector<8x128xf32>
    %69 = math.tanh %68 : vector<8x128xf32>
    %70 = vector.extract_strided_slice %55 {offsets = [0, 384], sizes = [8, 128], strides = [1, 1]} : vector<8x512xf32> to vector<8x128xf32>
    %71 = arith.negf %70 : vector<8x128xf32>
    %72 = math.exp %71 : vector<8x128xf32>
    %cst_27 = arith.constant 1.000000e+00 : f32
    %73 = vector.broadcast %cst_27 : f32 to vector<8x128xf32>
    %74 = arith.addf %73, %72 : vector<8x128xf32>
    %75 = arith.divf %73, %74 : vector<8x128xf32>
    %76 = arith.mulf %67, %41 : vector<8x128xf32>
    %77 = arith.mulf %61, %69 : vector<8x128xf32>
    %78 = arith.addf %76, %77 : vector<8x128xf32>
    %79 = math.tanh %78 : vector<8x128xf32>
    %80 = arith.mulf %75, %79 : vector<8x128xf32>
    %81 = vector.broadcast %c1_i32 : i32 to vector<8x1xi32>
    %82 = arith.cmpi sgt, %9, %81 : vector<8x1xi32>
    %83 = vector.shape_cast %82 : vector<8x1xi1> to vector<8x1xi1>
    %84 = vector.broadcast %83 : vector<8x1xi1> to vector<8x128xi1>
    %85 = arith.select %84, %80, %48 : vector<8x128xi1>, vector<8x128xf32>
    %c2_i32 = arith.constant 2 : i32
    %c8_i32_28 = arith.constant 8 : i32
    %86 = arith.muli %c2_i32, %c8_i32_28 : i32
    %87 = tpu.assume_multiple %86, 8 : i32
    %88 = arith.index_cast %87 : i32 to index
    %c0_29 = arith.constant 0 : index
    %89 = vector.load %arg7[%88, %c0_29] : memref<48x512xf32, #tpu.memory_space<vmem>>, vector<8x512xf32>
    %c0_30 = arith.constant 0 : index
    %c0_31 = arith.constant 0 : index
    %90 = vector.load %arg4[%c0_30, %c0_31] : memref<128x512xf32, #tpu.memory_space<vmem>>, vector<128x512xf32>
    %cst_32 = arith.constant dense<0.000000e+00> : vector<8x512xf32>
    %91 = tpu.matmul %85, %90, %cst_32 {dimension_numbers = #tpu.dot_dimension_numbers<[1], [0], [0], [1], [0, 0, 1, 1], [], []>} : vector<8x128xf32>, vector<128x512xf32>, vector<8x512xf32> -> vector<8x512xf32>
    %92 = arith.addf %89, %91 : vector<8x512xf32>
    %93 = vector.extract_strided_slice %92 {offsets = [0, 0], sizes = [8, 128], strides = [1, 1]} : vector<8x512xf32> to vector<8x128xf32>
    %94 = arith.negf %93 : vector<8x128xf32>
    %95 = math.exp %94 : vector<8x128xf32>
    %cst_33 = arith.constant 1.000000e+00 : f32
    %96 = vector.broadcast %cst_33 : f32 to vector<8x128xf32>
    %97 = arith.addf %96, %95 : vector<8x128xf32>
    %98 = arith.divf %96, %97 : vector<8x128xf32>
    %99 = vector.extract_strided_slice %92 {offsets = [0, 128], sizes = [8, 128], strides = [1, 1]} : vector<8x512xf32> to vector<8x128xf32>
    %100 = arith.negf %99 : vector<8x128xf32>
    %101 = math.exp %100 : vector<8x128xf32>
    %cst_34 = arith.constant 1.000000e+00 : f32
    %102 = vector.broadcast %cst_34 : f32 to vector<8x128xf32>
    %103 = arith.addf %102, %101 : vector<8x128xf32>
    %104 = arith.divf %102, %103 : vector<8x128xf32>
    %105 = vector.extract_strided_slice %92 {offsets = [0, 256], sizes = [8, 128], strides = [1, 1]} : vector<8x512xf32> to vector<8x128xf32>
    %106 = math.tanh %105 : vector<8x128xf32>
    %107 = vector.extract_strided_slice %92 {offsets = [0, 384], sizes = [8, 128], strides = [1, 1]} : vector<8x512xf32> to vector<8x128xf32>
    %108 = arith.negf %107 : vector<8x128xf32>
    %109 = math.exp %108 : vector<8x128xf32>
    %cst_35 = arith.constant 1.000000e+00 : f32
    %110 = vector.broadcast %cst_35 : f32 to vector<8x128xf32>
    %111 = arith.addf %110, %109 : vector<8x128xf32>
    %112 = arith.divf %110, %111 : vector<8x128xf32>
    %113 = arith.mulf %104, %78 : vector<8x128xf32>
    %114 = arith.mulf %98, %106 : vector<8x128xf32>
    %115 = arith.addf %113, %114 : vector<8x128xf32>
    %116 = math.tanh %115 : vector<8x128xf32>
    %117 = arith.mulf %112, %116 : vector<8x128xf32>
    %118 = vector.broadcast %c2_i32 : i32 to vector<8x1xi32>
    %119 = arith.cmpi sgt, %9, %118 : vector<8x1xi32>
    %120 = vector.shape_cast %119 : vector<8x1xi1> to vector<8x1xi1>
    %121 = vector.broadcast %120 : vector<8x1xi1> to vector<8x128xi1>
    %122 = arith.select %121, %117, %85 : vector<8x128xi1>, vector<8x128xf32>
    %c3_i32 = arith.constant 3 : i32
    %c8_i32_36 = arith.constant 8 : i32
    %123 = arith.muli %c3_i32, %c8_i32_36 : i32
    %124 = tpu.assume_multiple %123, 8 : i32
    %125 = arith.index_cast %124 : i32 to index
    %c0_37 = arith.constant 0 : index
    %126 = vector.load %arg7[%125, %c0_37] : memref<48x512xf32, #tpu.memory_space<vmem>>, vector<8x512xf32>
    %c0_38 = arith.constant 0 : index
    %c0_39 = arith.constant 0 : index
    %127 = vector.load %arg4[%c0_38, %c0_39] : memref<128x512xf32, #tpu.memory_space<vmem>>, vector<128x512xf32>
    %cst_40 = arith.constant dense<0.000000e+00> : vector<8x512xf32>
    %128 = tpu.matmul %122, %127, %cst_40 {dimension_numbers = #tpu.dot_dimension_numbers<[1], [0], [0], [1], [0, 0, 1, 1], [], []>} : vector<8x128xf32>, vector<128x512xf32>, vector<8x512xf32> -> vector<8x512xf32>
    %129 = arith.addf %126, %128 : vector<8x512xf32>
    %130 = vector.extract_strided_slice %129 {offsets = [0, 0], sizes = [8, 128], strides = [1, 1]} : vector<8x512xf32> to vector<8x128xf32>
    %131 = arith.negf %130 : vector<8x128xf32>
    %132 = math.exp %131 : vector<8x128xf32>
    %cst_41 = arith.constant 1.000000e+00 : f32
    %133 = vector.broadcast %cst_41 : f32 to vector<8x128xf32>
    %134 = arith.addf %133, %132 : vector<8x128xf32>
    %135 = arith.divf %133, %134 : vector<8x128xf32>
    %136 = vector.extract_strided_slice %129 {offsets = [0, 128], sizes = [8, 128], strides = [1, 1]} : vector<8x512xf32> to vector<8x128xf32>
    %137 = arith.negf %136 : vector<8x128xf32>
    %138 = math.exp %137 : vector<8x128xf32>
    %cst_42 = arith.constant 1.000000e+00 : f32
    %139 = vector.broadcast %cst_42 : f32 to vector<8x128xf32>
    %140 = arith.addf %139, %138 : vector<8x128xf32>
    %141 = arith.divf %139, %140 : vector<8x128xf32>
    %142 = vector.extract_strided_slice %129 {offsets = [0, 256], sizes = [8, 128], strides = [1, 1]} : vector<8x512xf32> to vector<8x128xf32>
    %143 = math.tanh %142 : vector<8x128xf32>
    %144 = vector.extract_strided_slice %129 {offsets = [0, 384], sizes = [8, 128], strides = [1, 1]} : vector<8x512xf32> to vector<8x128xf32>
    %145 = arith.negf %144 : vector<8x128xf32>
    %146 = math.exp %145 : vector<8x128xf32>
    %cst_43 = arith.constant 1.000000e+00 : f32
    %147 = vector.broadcast %cst_43 : f32 to vector<8x128xf32>
    %148 = arith.addf %147, %146 : vector<8x128xf32>
    %149 = arith.divf %147, %148 : vector<8x128xf32>
    %150 = arith.mulf %141, %115 : vector<8x128xf32>
    %151 = arith.mulf %135, %143 : vector<8x128xf32>
    %152 = arith.addf %150, %151 : vector<8x128xf32>
    %153 = math.tanh %152 : vector<8x128xf32>
    %154 = arith.mulf %149, %153 : vector<8x128xf32>
    %155 = vector.broadcast %c3_i32 : i32 to vector<8x1xi32>
    %156 = arith.cmpi sgt, %9, %155 : vector<8x1xi32>
    %157 = vector.shape_cast %156 : vector<8x1xi1> to vector<8x1xi1>
    %158 = vector.broadcast %157 : vector<8x1xi1> to vector<8x128xi1>
    %159 = arith.select %158, %154, %122 : vector<8x128xi1>, vector<8x128xf32>
    %c4_i32 = arith.constant 4 : i32
    %c8_i32_44 = arith.constant 8 : i32
    %160 = arith.muli %c4_i32, %c8_i32_44 : i32
    %161 = tpu.assume_multiple %160, 8 : i32
    %162 = arith.index_cast %161 : i32 to index
    %c0_45 = arith.constant 0 : index
    %163 = vector.load %arg7[%162, %c0_45] : memref<48x512xf32, #tpu.memory_space<vmem>>, vector<8x512xf32>
    %c0_46 = arith.constant 0 : index
    %c0_47 = arith.constant 0 : index
    %164 = vector.load %arg4[%c0_46, %c0_47] : memref<128x512xf32, #tpu.memory_space<vmem>>, vector<128x512xf32>
    %cst_48 = arith.constant dense<0.000000e+00> : vector<8x512xf32>
    %165 = tpu.matmul %159, %164, %cst_48 {dimension_numbers = #tpu.dot_dimension_numbers<[1], [0], [0], [1], [0, 0, 1, 1], [], []>} : vector<8x128xf32>, vector<128x512xf32>, vector<8x512xf32> -> vector<8x512xf32>
    %166 = arith.addf %163, %165 : vector<8x512xf32>
    %167 = vector.extract_strided_slice %166 {offsets = [0, 0], sizes = [8, 128], strides = [1, 1]} : vector<8x512xf32> to vector<8x128xf32>
    %168 = arith.negf %167 : vector<8x128xf32>
    %169 = math.exp %168 : vector<8x128xf32>
    %cst_49 = arith.constant 1.000000e+00 : f32
    %170 = vector.broadcast %cst_49 : f32 to vector<8x128xf32>
    %171 = arith.addf %170, %169 : vector<8x128xf32>
    %172 = arith.divf %170, %171 : vector<8x128xf32>
    %173 = vector.extract_strided_slice %166 {offsets = [0, 128], sizes = [8, 128], strides = [1, 1]} : vector<8x512xf32> to vector<8x128xf32>
    %174 = arith.negf %173 : vector<8x128xf32>
    %175 = math.exp %174 : vector<8x128xf32>
    %cst_50 = arith.constant 1.000000e+00 : f32
    %176 = vector.broadcast %cst_50 : f32 to vector<8x128xf32>
    %177 = arith.addf %176, %175 : vector<8x128xf32>
    %178 = arith.divf %176, %177 : vector<8x128xf32>
    %179 = vector.extract_strided_slice %166 {offsets = [0, 256], sizes = [8, 128], strides = [1, 1]} : vector<8x512xf32> to vector<8x128xf32>
    %180 = math.tanh %179 : vector<8x128xf32>
    %181 = vector.extract_strided_slice %166 {offsets = [0, 384], sizes = [8, 128], strides = [1, 1]} : vector<8x512xf32> to vector<8x128xf32>
    %182 = arith.negf %181 : vector<8x128xf32>
    %183 = math.exp %182 : vector<8x128xf32>
    %cst_51 = arith.constant 1.000000e+00 : f32
    %184 = vector.broadcast %cst_51 : f32 to vector<8x128xf32>
    %185 = arith.addf %184, %183 : vector<8x128xf32>
    %186 = arith.divf %184, %185 : vector<8x128xf32>
    %187 = arith.mulf %178, %152 : vector<8x128xf32>
    %188 = arith.mulf %172, %180 : vector<8x128xf32>
    %189 = arith.addf %187, %188 : vector<8x128xf32>
    %190 = math.tanh %189 : vector<8x128xf32>
    %191 = arith.mulf %186, %190 : vector<8x128xf32>
    %192 = vector.broadcast %c4_i32 : i32 to vector<8x1xi32>
    %193 = arith.cmpi sgt, %9, %192 : vector<8x1xi32>
    %194 = vector.shape_cast %193 : vector<8x1xi1> to vector<8x1xi1>
    %195 = vector.broadcast %194 : vector<8x1xi1> to vector<8x128xi1>
    %196 = arith.select %195, %191, %159 : vector<8x128xi1>, vector<8x128xf32>
    %c5_i32 = arith.constant 5 : i32
    %c8_i32_52 = arith.constant 8 : i32
    %197 = arith.muli %c5_i32, %c8_i32_52 : i32
    %198 = tpu.assume_multiple %197, 8 : i32
    %199 = arith.index_cast %198 : i32 to index
    %c0_53 = arith.constant 0 : index
    %200 = vector.load %arg7[%199, %c0_53] : memref<48x512xf32, #tpu.memory_space<vmem>>, vector<8x512xf32>
    %c0_54 = arith.constant 0 : index
    %c0_55 = arith.constant 0 : index
    %201 = vector.load %arg4[%c0_54, %c0_55] : memref<128x512xf32, #tpu.memory_space<vmem>>, vector<128x512xf32>
    %cst_56 = arith.constant dense<0.000000e+00> : vector<8x512xf32>
    %202 = tpu.matmul %196, %201, %cst_56 {dimension_numbers = #tpu.dot_dimension_numbers<[1], [0], [0], [1], [0, 0, 1, 1], [], []>} : vector<8x128xf32>, vector<128x512xf32>, vector<8x512xf32> -> vector<8x512xf32>
    %203 = arith.addf %200, %202 : vector<8x512xf32>
    %204 = vector.extract_strided_slice %203 {offsets = [0, 0], sizes = [8, 128], strides = [1, 1]} : vector<8x512xf32> to vector<8x128xf32>
    %205 = arith.negf %204 : vector<8x128xf32>
    %206 = math.exp %205 : vector<8x128xf32>
    %cst_57 = arith.constant 1.000000e+00 : f32
    %207 = vector.broadcast %cst_57 : f32 to vector<8x128xf32>
    %208 = arith.addf %207, %206 : vector<8x128xf32>
    %209 = arith.divf %207, %208 : vector<8x128xf32>
    %210 = vector.extract_strided_slice %203 {offsets = [0, 128], sizes = [8, 128], strides = [1, 1]} : vector<8x512xf32> to vector<8x128xf32>
    %211 = arith.negf %210 : vector<8x128xf32>
    %212 = math.exp %211 : vector<8x128xf32>
    %cst_58 = arith.constant 1.000000e+00 : f32
    %213 = vector.broadcast %cst_58 : f32 to vector<8x128xf32>
    %214 = arith.addf %213, %212 : vector<8x128xf32>
    %215 = arith.divf %213, %214 : vector<8x128xf32>
    %216 = vector.extract_strided_slice %203 {offsets = [0, 256], sizes = [8, 128], strides = [1, 1]} : vector<8x512xf32> to vector<8x128xf32>
    %217 = math.tanh %216 : vector<8x128xf32>
    %218 = vector.extract_strided_slice %203 {offsets = [0, 384], sizes = [8, 128], strides = [1, 1]} : vector<8x512xf32> to vector<8x128xf32>
    %219 = arith.negf %218 : vector<8x128xf32>
    %220 = math.exp %219 : vector<8x128xf32>
    %cst_59 = arith.constant 1.000000e+00 : f32
    %221 = vector.broadcast %cst_59 : f32 to vector<8x128xf32>
    %222 = arith.addf %221, %220 : vector<8x128xf32>
    %223 = arith.divf %221, %222 : vector<8x128xf32>
    %224 = arith.mulf %215, %189 : vector<8x128xf32>
    %225 = arith.mulf %209, %217 : vector<8x128xf32>
    %226 = arith.addf %224, %225 : vector<8x128xf32>
    %227 = math.tanh %226 : vector<8x128xf32>
    %228 = arith.mulf %223, %227 : vector<8x128xf32>
    %229 = vector.broadcast %c5_i32 : i32 to vector<8x1xi32>
    %230 = arith.cmpi sgt, %9, %229 : vector<8x1xi32>
    %231 = vector.shape_cast %230 : vector<8x1xi1> to vector<8x1xi1>
    %232 = vector.broadcast %231 : vector<8x1xi1> to vector<8x128xi1>
    %233 = arith.select %232, %228, %196 : vector<8x128xi1>, vector<8x128xf32>
    %c6_i32 = arith.constant 6 : i32
    %c0_60 = arith.constant 0 : index
    %c0_61 = arith.constant 0 : index
    %234 = vector.load %arg6[%c0_60, %c0_61] : memref<8x128xf32, #tpu.memory_space<vmem>>, vector<8x128xf32>
    tpu.vector_store %arg6[%c0_60, %c0_61], %233 {strides = array<i32>} : memref<8x128xf32, #tpu.memory_space<vmem>>, vector<8x128xf32>,
    return
  }
  func.func @transform_0(%arg0: i32) -> (i32, i32, i32) {
    %c0_i32 = arith.constant 0 : i32
    %c0_i32_0 = arith.constant 0 : i32
    %c0_i32_1 = arith.constant 0 : i32
    return %arg0, %c0_i32, %c0_i32_0 : i32, i32, i32
  }
  func.func @transform_1(%arg0: i32) -> (i32, i32, i32) {
    %c0_i32 = arith.constant 0 : i32
    %c0_i32_0 = arith.constant 0 : i32
    %c0_i32_1 = arith.constant 0 : i32
    return %arg0, %c0_i32, %c0_i32_0 : i32, i32, i32
  }
  func.func @transform_2(%arg0: i32) -> (i32, i32) {
    %c0_i32 = arith.constant 0 : i32
    %c0_i32_0 = arith.constant 0 : i32
    %c0_i32_1 = arith.constant 0 : i32
    return %c0_i32, %c0_i32_0 : i32, i32
  }
  func.func @transform_3(%arg0: i32) -> (i32, i32) {
    %c0_i32 = arith.constant 0 : i32
    %c0_i32_0 = arith.constant 0 : i32
    %c0_i32_1 = arith.constant 0 : i32
    return %c0_i32, %c0_i32_0 : i32, i32
  }
  func.func @transform_4(%arg0: i32) -> (i32, i32) {
    %c0_i32 = arith.constant 0 : i32
    %c0_i32_0 = arith.constant 0 : i32
    %c0_i32_1 = arith.constant 0 : i32
    return %c0_i32, %c0_i32_0 : i32, i32
  }
  func.func @transform_5(%arg0: i32) -> (i32, i32) {
    %c0_i32 = arith.constant 0 : i32
    %c0_i32_0 = arith.constant 0 : i32
    return %arg0, %c0_i32 : i32, i32
  }
}

</mosaic_0001>

<llo_original>
// kernel: tpu_custom_call.1
$region0: #{tpu_custom_call.1}
  #allocation0 [shape = 'u32[]', space=smem, size = 0x4, offset = 0x4, fixed_abs, tag = 'smem constant byte address 0x4 - core index']
  #allocation1 [shape = 'u32[72,128]{1,0:T(1,128)}', space=vmem, size = 0x9000, scoped, tag = 'internal scratch']
  #allocation2 [shape = 'f32[48,512]{1,0:T(8,128)}', space=vmem, size = 0x18000, scoped, tag = 'scratch operand']
  %s0 = inlined_call_operand.hbm [shape: f32[1,48,128], index: 0, kind: input, shape index: {}]
  %s1 = inlined_call_operand.vmem [shape: s32[1,8,1], index: 1, kind: input, shape index: {}]
  %s2 = inlined_call_operand.hbm [shape: f32[128,512], index: 2, kind: input, shape index: {}]
  %s3 = inlined_call_operand.hbm [shape: f32[128,512], index: 3, kind: input, shape index: {}]
  %s4 = inlined_call_operand.vmem [shape: f32[1,512], index: 4, kind: input, shape index: {}]
  %s5 = inlined_call_operand.hbm [shape: f32[8,128], index: 5, kind: output, shape index: {}]
  %s6 = sld [smem:[#allocation0]]
  $region42: #{tpu_custom_call.1} parent=0
    _
  %s8 = ssub.s32 1, %s6
  %s9 = scalar_select 0, %s8, %s6
  $region1: #{tpu_custom_call.1} parent=0
    #allocation3 [shape = 'u8[24576]{0}', space=vmem, size = 0x6000, scoped, tag = 'input window, operand 0, single buffered']
    #allocation4 [shape = 's32[1]{0}', space=sflag, size = 0x4, scoped, tag = 'scoped memory for tpu_custom_call.1']
    #allocation5 [shape = 's32[1]{0}', space=sflag, size = 0x4, scoped, tag = 'scoped memory for tpu_custom_call.1']
    #allocation6 [shape = 'u8[262144]{0}', space=vmem, size = 0x40000, scoped, tag = 'input window, operand 2, single buffered']
    #allocation7 [shape = 's32[1]{0}', space=sflag, size = 0x4, scoped, tag = 'scoped memory for tpu_custom_call.1']
    #allocation8 [shape = 'u8[262144]{0}', space=vmem, size = 0x40000, scoped, tag = 'input window, operand 3, single buffered']
    #allocation9 [shape = 'u8[4096]{0}', space=vmem, size = 0x1000, scoped, tag = 'output window, operand 0, single buffered']
    %10 = vsyncpa [#allocation4], 0
    %11 = vsyncpa [#allocation7], 0
    %12 = vsyncpa [#allocation5], 0
    // Predicated region
    $region2: #{tpu_custom_call.1} parent=1 // pred_check
      _
    $region3: #{tpu_custom_call.1} parent=1 // pred_check_branch
      %14 = sbr.rel (0) target = $region5
    $region4: #{tpu_custom_call.1} parent=1 // pred_region
      %16 = vsyncadd [#allocation4], 0
      %s17 = sshll.u32 %s0, 4
      %s18 = int_to_ptr.hbm [resolvable:$true] %s17
      %s19 = sshll.u32 [#allocation3], 4
      %s20 = int_to_ptr.vmem [resolvable:$true] %s19
      %25 = dma.hbm_to_vmem [thread:$0]  %s18, 768, %s20, [#allocation4], 128, 128, 8
    $region5: #{tpu_custom_call.1} parent=1 // pred_fallthru
      _
    // Predicated region
    $region6: #{tpu_custom_call.1} parent=1 // pred_check
      _
    $region7: #{tpu_custom_call.1} parent=1 // pred_check_branch
      %27 = sbr.rel (0) target = $region9
    $region8: #{tpu_custom_call.1} parent=1 // pred_region
      _
    $region9: #{tpu_custom_call.1} parent=1 // pred_fallthru
      _
    // Predicated region
    $region10: #{tpu_custom_call.1} parent=1 // pred_check
      _
    $region11: #{tpu_custom_call.1} parent=1 // pred_check_branch
      %29 = sbr.rel (0) target = $region13
    $region12: #{tpu_custom_call.1} parent=1 // pred_region
      %31 = vsyncadd [#allocation7], 0
      %s32 = sshll.u32 %s2, 4
      %s33 = int_to_ptr.hbm [resolvable:$true] %s32
      %s34 = sshll.u32 [#allocation6], 4
      %s35 = int_to_ptr.vmem [resolvable:$true] %s34
      %40 = dma.hbm_to_vmem [thread:$0]  %s33, 8192, %s35, [#allocation7], 512, 512, 32
    $region13: #{tpu_custom_call.1} parent=1 // pred_fallthru
      _
    // Predicated region
    $region14: #{tpu_custom_call.1} parent=1 // pred_check
      _
    $region15: #{tpu_custom_call.1} parent=1 // pred_check_branch
      %42 = sbr.rel (0) target = $region17
    $region16: #{tpu_custom_call.1} parent=1 // pred_region
      %44 = vsyncadd [#allocation7], 0
      %s45 = sshll.u32 %s3, 4
      %s46 = int_to_ptr.hbm [resolvable:$true] %s45
      %s47 = sshll.u32 [#allocation8], 4
      %s48 = int_to_ptr.vmem [resolvable:$true] %s47
      %53 = dma.hbm_to_vmem [thread:$0]  %s46, 8192, %s48, [#allocation7], 512, 512, 32
    $region17: #{tpu_custom_call.1} parent=1 // pred_fallthru
      _
    // Predicated region
    $region18: #{tpu_custom_call.1} parent=1 // pred_check
      _
    $region19: #{tpu_custom_call.1} parent=1 // pred_check_branch
      %55 = sbr.rel (0) target = $region21
    $region20: #{tpu_custom_call.1} parent=1 // pred_region
      _
    $region21: #{tpu_custom_call.1} parent=1 // pred_fallthru
      _
    // Predicated region
    $region22: #{tpu_custom_call.1} parent=1 // pred_check
      _
    $region23: #{tpu_custom_call.1} parent=1 // pred_check_branch
      %57 = sbr.rel (0) target = $region25
    $region24: #{tpu_custom_call.1} parent=1 // pred_region
      %59 = dma.done [#allocation4], 768
    $region25: #{tpu_custom_call.1} parent=1 // pred_fallthru
      _
    // Predicated region
    $region26: #{tpu_custom_call.1} parent=1 // pred_check
      _
    $region27: #{tpu_custom_call.1} parent=1 // pred_check_branch
      %61 = sbr.rel (0) target = $region29
    $region28: #{tpu_custom_call.1} parent=1 // pred_region
      %63 = dma.done [#allocation7], 8192
    $region29: #{tpu_custom_call.1} parent=1 // pred_fallthru
      _
    // Predicated region
    $region30: #{tpu_custom_call.1} parent=1 // pred_check
      _
    $region31: #{tpu_custom_call.1} parent=1 // pred_check_branch
      %65 = sbr.rel (0) target = $region33
    $region32: #{tpu_custom_call.1} parent=1 // pred_region
      %67 = dma.done [#allocation7], 8192
    $region33: #{tpu_custom_call.1} parent=1 // pred_fallthru
      _
    %v68 = vld [vmem:[#allocation3] sm:$0xff]
    %v69 = vld [vmem:[#allocation3 + $0x8] sm:$0xff]
    %v70 = vld [vmem:[#allocation3 + $0x10] sm:$0xff]
    %v71 = vld [vmem:[#allocation3 + $0x18] sm:$0xff]
    %v72 = vld [vmem:[#allocation3 + $0x20] sm:$0xff]
    %v73 = vld [vmem:[#allocation3 + $0x28] sm:$0xff]
    %v74 = vld [vmem:[#allocation6] sm:$0xff]
    %v75 = vld [vmem:[#allocation6 + $0x8] sm:$0xff]
    %v76 = vld [vmem:[#allocation6 + $0x10] sm:$0xff]
    %v77 = vld [vmem:[#allocation6 + $0x18] sm:$0xff]
    %v78 = vld [vmem:[#allocation6 + $0x20] sm:$0xff]
    %v79 = vld [vmem:[#allocation6 + $0x28] sm:$0xff]
    %v80 = vld [vmem:[#allocation6 + $0x30] sm:$0xff]
    %v81 = vld [vmem:[#allocation6 + $0x38] sm:$0xff]
    %v82 = vld [vmem:[#allocation6 + $0x40] sm:$0xff]
    %v83 = vld [vmem:[#allocation6 + $0x48] sm:$0xff]
    %v84 = vld [vmem:[#allocation6 + $0x50] sm:$0xff]
    %v85 = vld [vmem:[#allocation6 + $0x58] sm:$0xff]
    %v86 = vld [vmem:[#allocation6 + $0x60] sm:$0xff]
    %v87 = vld [vmem:[#allocation6 + $0x68] sm:$0xff]
    %v88 = vld [vmem:[#allocation6 + $0x70] sm:$0xff]
    %v89 = vld [vmem:[#allocation6 + $0x78] sm:$0xff]
    %v90 = vld [vmem:[#allocation6 + $0x80] sm:$0xff]
    %v91 = vld [vmem:[#allocation6 + $0x88] sm:$0xff]
    %v92 = vld [vmem:[#allocation6 + $0x90] sm:$0xff]
    %v93 = vld [vmem:[#allocation6 + $0x98] sm:$0xff]
    %v94 = vld [vmem:[#allocation6 + $0xa0] sm:$0xff]
    %v95 = vld [vmem:[#allocation6 + $0xa8] sm:$0xff]
    %v96 = vld [vmem:[#allocation6 + $0xb0] sm:$0xff]
    %v97 = vld [vmem:[#allocation6 + $0xb8] sm:$0xff]
    %v98 = vld [vmem:[#allocation6 + $0xc0] sm:$0xff]
    %v99 = vld [vmem:[#allocation6 + $0xc8] sm:$0xff]
    %v100 = vld [vmem:[#allocation6 + $0xd0] sm:$0xff]
    %v101 = vld [vmem:[#allocation6 + $0xd8] sm:$0xff]
    %v102 = vld [vmem:[#allocation6 + $0xe0] sm:$0xff]
    %v103 = vld [vmem:[#allocation6 + $0xe8] sm:$0xff]
    %v104 = vld [vmem:[#allocation6 + $0xf0] sm:$0xff]
    %v105 = vld [vmem:[#allocation6 + $0xf8] sm:$0xff]
    %v106 = vld [vmem:[#allocation6 + $0x100] sm:$0xff]
    %v107 = vld [vmem:[#allocation6 + $0x108] sm:$0xff]
    %v108 = vld [vmem:[#allocation6 + $0x110] sm:$0xff]
    %v109 = vld [vmem:[#allocation6 + $0x118] sm:$0xff]
    %v110 = vld [vmem:[#allocation6 + $0x120] sm:$0xff]
    %v111 = vld [vmem:[#allocation6 + $0x128] sm:$0xff]
    %v112 = vld [vmem:[#allocation6 + $0x130] sm:$0xff]
    %v113 = vld [vmem:[#allocation6 + $0x138] sm:$0xff]
    %v114 = vld [vmem:[#allocation6 + $0x140] sm:$0xff]
    %v115 = vld [vmem:[#allocation6 + $0x148] sm:$0xff]
    %v116 = vld [vmem:[#allocation6 + $0x150] sm:$0xff]
    %v117 = vld [vmem:[#allocation6 + $0x158] sm:$0xff]
    %v118 = vld [vmem:[#allocation6 + $0x160] sm:$0xff]
    %v119 = vld [vmem:[#allocation6 + $0x168] sm:$0xff]
    %v120 = vld [vmem:[#allocation6 + $0x170] sm:$0xff]
    %v121 = vld [vmem:[#allocation6 + $0x178] sm:$0xff]
    %v122 = vld [vmem:[#allocation6 + $0x180] sm:$0xff]
    %v123 = vld [vmem:[#allocation6 + $0x188] sm:$0xff]
    %v124 = vld [vmem:[#allocation6 + $0x190] sm:$0xff]
    %v125 = vld [vmem:[#allocation6 + $0x198] sm:$0xff]
    %v126 = vld [vmem:[#allocation6 + $0x1a0] sm:$0xff]
    %v127 = vld [vmem:[#allocation6 + $0x1a8] sm:$0xff]
    %v128 = vld [vmem:[#allocation6 + $0x1b0] sm:$0xff]
    %v129 = vld [vmem:[#allocation6 + $0x1b8] sm:$0xff]
    %v130 = vld [vmem:[#allocation6 + $0x1c0] sm:$0xff]
    %v131 = vld [vmem:[#allocation6 + $0x1c8] sm:$0xff]
    %v132 = vld [vmem:[#allocation6 + $0x1d0] sm:$0xff]
    %v133 = vld [vmem:[#allocation6 + $0x1d8] sm:$0xff]
    %v134 = vld [vmem:[#allocation6 + $0x1e0] sm:$0xff]
    %v135 = vld [vmem:[#allocation6 + $0x1e8] sm:$0xff]
    %v136 = vld [vmem:[#allocation6 + $0x1f0] sm:$0xff]
    %v137 = vld [vmem:[#allocation6 + $0x1f8] sm:$0xff]
    %v138 = vld [vmem:[%s4] sm:$0xf]
    %v140 = vperm.slane %v138, 0
    %v141 = vperm.slane %v138, 1
    %v142 = vperm.slane %v138, 2
    %v143 = vperm.slane %v138, 3
    %148 = vmatpush.msra.mxu0 %v134
    %149 = vmatpush.msra.mxu0 %v130
    %150 = vmatpush.msra.mxu0 %v126
    %151 = vmatpush.msra.mxu0 %v122
    %152 = vmatpush.msra.mxu0 %v118
    %153 = vmatpush.msra.mxu0 %v114
    %154 = vmatpush.msra.mxu0 %v110
    %155 = vmatpush.msra.mxu0 %v106
    %156 = vmatpush.msra.mxu0 %v102
    %157 = vmatpush.msra.mxu0 %v98
    %158 = vmatpush.msra.mxu0 %v94
    %159 = vmatpush.msra.mxu0 %v90
    %160 = vmatpush.msra.mxu0 %v86
    %161 = vmatpush.msra.mxu0 %v82
    %162 = vmatpush.msra.mxu0 %v78
    %163 = vmatpush.msra.mxu0 %v74
    %164 = vmatmul.f32.gmra.mxu0 %v68
    %v165 = vpop.f32.mrf.mxu0
    %v166 = vadd.f32 %v140, %v165
    %167 = vmatmul.f32.gmra.mxu0 %v69
    %v168 = vpop.f32.mrf.mxu0
    %v169 = vadd.f32 %v140, %v168
    %170 = vmatmul.f32.gmra.mxu0 %v70
    %v171 = vpop.f32.mrf.mxu0
    %v172 = vadd.f32 %v140, %v171
    %173 = vmatmul.f32.gmra.mxu0 %v71
    %v174 = vpop.f32.mrf.mxu0
    %v175 = vadd.f32 %v140, %v174
    %176 = vmatmul.f32.gmra.mxu0 %v72
    %v177 = vpop.f32.mrf.mxu0
    %v178 = vadd.f32 %v140, %v177
    %179 = vmatmul.f32.gmra.mxu0 %v73
    %v180 = vpop.f32.mrf.mxu0
    %v181 = vadd.f32 %v140, %v180
    %182 = vdwg.mxu0
    %183 = vmatpush.msra.mxu0 %v135
    %184 = vmatpush.msra.mxu0 %v131
    %185 = vmatpush.msra.mxu0 %v127
    %186 = vmatpush.msra.mxu0 %v123
    %187 = vmatpush.msra.mxu0 %v119
    %188 = vmatpush.msra.mxu0 %v115
    %189 = vmatpush.msra.mxu0 %v111
    %190 = vmatpush.msra.mxu0 %v107
    %191 = vmatpush.msra.mxu0 %v103
    %192 = vmatpush.msra.mxu0 %v99
    %193 = vmatpush.msra.mxu0 %v95
    %194 = vmatpush.msra.mxu0 %v91
    %195 = vmatpush.msra.mxu0 %v87
    %196 = vmatpush.msra.mxu0 %v83
    %197 = vmatpush.msra.mxu0 %v79
    %198 = vmatpush.msra.mxu0 %v75
    %199 = vmatmul.f32.gmra.mxu0 %v68
    %v200 = vpop.f32.mrf.mxu0
    %v201 = vadd.f32 %v141, %v200
    %202 = vmatmul.f32.gmra.mxu0 %v69
    %v203 = vpop.f32.mrf.mxu0
    %v204 = vadd.f32 %v141, %v203
    %205 = vmatmul.f32.gmra.mxu0 %v70
    %v206 = vpop.f32.mrf.mxu0
    %v207 = vadd.f32 %v141, %v206
    %208 = vmatmul.f32.gmra.mxu0 %v71
    %v209 = vpop.f32.mrf.mxu0
    %v210 = vadd.f32 %v141, %v209
    %211 = vmatmul.f32.gmra.mxu0 %v72
    %v212 = vpop.f32.mrf.mxu0
    %v213 = vadd.f32 %v141, %v212
    %214 = vmatmul.f32.gmra.mxu0 %v73
    %v215 = vpop.f32.mrf.mxu0
    %v216 = vadd.f32 %v141, %v215
    %217 = vdwg.mxu0
    %218 = vmatpush.msra.mxu0 %v136
    %219 = vmatpush.msra.mxu0 %v132
    %220 = vmatpush.msra.mxu0 %v128
    %221 = vmatpush.msra.mxu0 %v124
    %222 = vmatpush.msra.mxu0 %v120
    %223 = vmatpush.msra.mxu0 %v116
    %224 = vmatpush.msra.mxu0 %v112
    %225 = vmatpush.msra.mxu0 %v108
    %226 = vmatpush.msra.mxu0 %v104
    %227 = vmatpush.msra.mxu0 %v100
    %228 = vmatpush.msra.mxu0 %v96
    %229 = vmatpush.msra.mxu0 %v92
    %230 = vmatpush.msra.mxu0 %v88
    %231 = vmatpush.msra.mxu0 %v84
    %232 = vmatpush.msra.mxu0 %v80
    %233 = vmatpush.msra.mxu0 %v76
    %234 = vmatmul.f32.gmra.mxu0 %v68
    %v235 = vpop.f32.mrf.mxu0
    %v236 = vadd.f32 %v142, %v235
    %237 = vmatmul.f32.gmra.mxu0 %v69
    %v238 = vpop.f32.mrf.mxu0
    %v239 = vadd.f32 %v142, %v238
    %240 = vmatmul.f32.gmra.mxu0 %v70
    %v241 = vpop.f32.mrf.mxu0
    %v242 = vadd.f32 %v142, %v241
    %243 = vmatmul.f32.gmra.mxu0 %v71
    %v244 = vpop.f32.mrf.mxu0
    %v245 = vadd.f32 %v142, %v244
    %246 = vmatmul.f32.gmra.mxu0 %v72
    %v247 = vpop.f32.mrf.mxu0
    %v248 = vadd.f32 %v142, %v247
    %249 = vmatmul.f32.gmra.mxu0 %v73
    %v250 = vpop.f32.mrf.mxu0
    %v251 = vadd.f32 %v142, %v250
    %252 = vdwg.mxu0
    %253 = vmatpush.msra.mxu0 %v137
    %254 = vmatpush.msra.mxu0 %v133
    %255 = vmatpush.msra.mxu0 %v129
    %256 = vmatpush.msra.mxu0 %v125
    %257 = vmatpush.msra.mxu0 %v121
    %258 = vmatpush.msra.mxu0 %v117
    %259 = vmatpush.msra.mxu0 %v113
    %260 = vmatpush.msra.mxu0 %v109
    %261 = vmatpush.msra.mxu0 %v105
    %262 = vmatpush.msra.mxu0 %v101
    %263 = vmatpush.msra.mxu0 %v97
    %264 = vmatpush.msra.mxu0 %v93
    %265 = vmatpush.msra.mxu0 %v89
    %266 = vmatpush.msra.mxu0 %v85
    %267 = vmatpush.msra.mxu0 %v81
    %268 = vmatpush.msra.mxu0 %v77
    %269 = vmatmul.f32.gmra.mxu0 %v68
    %v270 = vpop.f32.mrf.mxu0
    %v271 = vadd.f32 %v143, %v270
    %272 = vmatmul.f32.gmra.mxu0 %v69
    %v273 = vpop.f32.mrf.mxu0
    %v274 = vadd.f32 %v143, %v273
    %275 = vmatmul.f32.gmra.mxu0 %v70
    %v276 = vpop.f32.mrf.mxu0
    %v277 = vadd.f32 %v143, %v276
    %278 = vmatmul.f32.gmra.mxu0 %v71
    %v279 = vpop.f32.mrf.mxu0
    %v280 = vadd.f32 %v143, %v279
    %281 = vmatmul.f32.gmra.mxu0 %v72
    %v282 = vpop.f32.mrf.mxu0
    %v283 = vadd.f32 %v143, %v282
    %284 = vmatmul.f32.gmra.mxu0 %v73
    %v285 = vpop.f32.mrf.mxu0
    %v286 = vadd.f32 %v143, %v285
    %287 = vdwg.mxu0
    %288 = vst [vmem:[#allocation2] sm:$0xff] %v166
    %289 = vst [vmem:[#allocation2 + $0x8] sm:$0xff] %v201
    %290 = vst [vmem:[#allocation2 + $0x10] sm:$0xff] %v236
    %291 = vst [vmem:[#allocation2 + $0x18] sm:$0xff] %v271
    %292 = vst [vmem:[#allocation2 + $0x20] sm:$0xff] %v169
    %293 = vst [vmem:[#allocation2 + $0x28] sm:$0xff] %v204
    %294 = vst [vmem:[#allocation2 + $0x30] sm:$0xff] %v239
    %295 = vst [vmem:[#allocation2 + $0x38] sm:$0xff] %v274
    %296 = vst [vmem:[#allocation2 + $0x40] sm:$0xff] %v172
    %297 = vst [vmem:[#allocation2 + $0x48] sm:$0xff] %v207
    %298 = vst [vmem:[#allocation2 + $0x50] sm:$0xff] %v242
    %299 = vst [vmem:[#allocation2 + $0x58] sm:$0xff] %v277
    %300 = vst [vmem:[#allocation2 + $0x60] sm:$0xff] %v175
    %301 = vst [vmem:[#allocation2 + $0x68] sm:$0xff] %v210
    %302 = vst [vmem:[#allocation2 + $0x70] sm:$0xff] %v245
    %303 = vst [vmem:[#allocation2 + $0x78] sm:$0xff] %v280
    %304 = vst [vmem:[#allocation2 + $0x80] sm:$0xff] %v178
    %305 = vst [vmem:[#allocation2 + $0x88] sm:$0xff] %v213
    %306 = vst [vmem:[#allocation2 + $0x90] sm:$0xff] %v248
    %307 = vst [vmem:[#allocation2 + $0x98] sm:$0xff] %v283
    %308 = vst [vmem:[#allocation2 + $0xa0] sm:$0xff] %v181
    %309 = vst [vmem:[#allocation2 + $0xa8] sm:$0xff] %v216
    %310 = vst [vmem:[#allocation2 + $0xb0] sm:$0xff] %v251
    %311 = vst [vmem:[#allocation2 + $0xb8] sm:$0xff] %v286
    %v312 = vld [vmem:[%s1] sm:$0xff]
    %s313 = smul.u32 0, 4
    %s314 = smul.addr %s313, 8
    %s315 = scalar_lea.vmem [#allocation2], %s314
    %v316 = vld [vmem:[%s315] sm:$0xff]
    %v317 = vld [vmem:[%s315 + $0x8] sm:$0xff]
    %v318 = vld [vmem:[%s315 + $0x10] sm:$0xff]
    %v319 = vld [vmem:[%s315 + $0x18] sm:$0xff]
    %v320 = vld [vmem:[#allocation8] sm:$0xff]
    %v321 = vld [vmem:[#allocation8 + $0x8] sm:$0xff]
    %v322 = vld [vmem:[#allocation8 + $0x10] sm:$0xff]
    %v323 = vld [vmem:[#allocation8 + $0x18] sm:$0xff]
    %v324 = vld [vmem:[#allocation8 + $0x20] sm:$0xff]
    %v325 = vld [vmem:[#allocation8 + $0x28] sm:$0xff]
    %v326 = vld [vmem:[#allocation8 + $0x30] sm:$0xff]
    %v327 = vld [vmem:[#allocation8 + $0x38] sm:$0xff]
    %v328 = vld [vmem:[#allocation8 + $0x40] sm:$0xff]
    %v329 = vld [vmem:[#allocation8 + $0x48] sm:$0xff]
    %v330 = vld [vmem:[#allocation8 + $0x50] sm:$0xff]
    %v331 = vld [vmem:[#allocation8 + $0x58] sm:$0xff]
    %v332 = vld [vmem:[#allocation8 + $0x60] sm:$0xff]
    %v333 = vld [vmem:[#allocation8 + $0x68] sm:$0xff]
    %v334 = vld [vmem:[#allocation8 + $0x70] sm:$0xff]
    %v335 = vld [vmem:[#allocation8 + $0x78] sm:$0xff]
    %v336 = vld [vmem:[#allocation8 + $0x80] sm:$0xff]
    %v337 = vld [vmem:[#allocation8 + $0x88] sm:$0xff]
    %v338 = vld [vmem:[#allocation8 + $0x90] sm:$0xff]
    %v339 = vld [vmem:[#allocation8 + $0x98] sm:$0xff]
    %v340 = vld [vmem:[#allocation8 + $0xa0] sm:$0xff]
    %v341 = vld [vmem:[#allocation8 + $0xa8] sm:$0xff]
    %v342 = vld [vmem:[#allocation8 + $0xb0] sm:$0xff]
    %v343 = vld [vmem:[#allocation8 + $0xb8] sm:$0xff]
    %v344 = vld [vmem:[#allocation8 + $0xc0] sm:$0xff]
    %v345 = vld [vmem:[#allocation8 + $0xc8] sm:$0xff]
    %v346 = vld [vmem:[#allocation8 + $0xd0] sm:$0xff]
    %v347 = vld [vmem:[#allocation8 + $0xd8] sm:$0xff]
    %v348 = vld [vmem:[#allocation8 + $0xe0] sm:$0xff]
    %v349 = vld [vmem:[#allocation8 + $0xe8] sm:$0xff]
    %v350 = vld [vmem:[#allocation8 + $0xf0] sm:$0xff]
    %v351 = vld [vmem:[#allocation8 + $0xf8] sm:$0xff]
    %v352 = vld [vmem:[#allocation8 + $0x100] sm:$0xff]
    %v353 = vld [vmem:[#allocation8 + $0x108] sm:$0xff]
    %v354 = vld [vmem:[#allocation8 + $0x110] sm:$0xff]
    %v355 = vld [vmem:[#allocation8 + $0x118] sm:$0xff]
    %v356 = vld [vmem:[#allocation8 + $0x120] sm:$0xff]
    %v357 = vld [vmem:[#allocation8 + $0x128] sm:$0xff]
    %v358 = vld [vmem:[#allocation8 + $0x130] sm:$0xff]
    %v359 = vld [vmem:[#allocation8 + $0x138] sm:$0xff]
    %v360 = vld [vmem:[#allocation8 + $0x140] sm:$0xff]
    %v361 = vld [vmem:[#allocation8 + $0x148] sm:$0xff]
    %v362 = vld [vmem:[#allocation8 + $0x150] sm:$0xff]
    %v363 = vld [vmem:[#allocation8 + $0x158] sm:$0xff]
    %v364 = vld [vmem:[#allocation8 + $0x160] sm:$0xff]
    %v365 = vld [vmem:[#allocation8 + $0x168] sm:$0xff]
    %v366 = vld [vmem:[#allocation8 + $0x170] sm:$0xff]
    %v367 = vld [vmem:[#allocation8 + $0x178] sm:$0xff]
    %v368 = vld [vmem:[#allocation8 + $0x180] sm:$0xff]
    %v369 = vld [vmem:[#allocation8 + $0x188] sm:$0xff]
    %v370 = vld [vmem:[#allocation8 + $0x190] sm:$0xff]
    %v371 = vld [vmem:[#allocation8 + $0x198] sm:$0xff]
    %v372 = vld [vmem:[#allocation8 + $0x1a0] sm:$0xff]
    %v373 = vld [vmem:[#allocation8 + $0x1a8] sm:$0xff]
    %v374 = vld [vmem:[#allocation8 + $0x1b0] sm:$0xff]
    %v375 = vld [vmem:[#allocation8 + $0x1b8] sm:$0xff]
    %v376 = vld [vmem:[#allocation8 + $0x1c0] sm:$0xff]
    %v377 = vld [vmem:[#allocation8 + $0x1c8] sm:$0xff]
    %v378 = vld [vmem:[#allocation8 + $0x1d0] sm:$0xff]
    %v379 = vld [vmem:[#allocation8 + $0x1d8] sm:$0xff]
    %v380 = vld [vmem:[#allocation8 + $0x1e0] sm:$0xff]
    %v381 = vld [vmem:[#allocation8 + $0x1e8] sm:$0xff]
    %v382 = vld [vmem:[#allocation8 + $0x1f0] sm:$0xff]
    %v383 = vld [vmem:[#allocation8 + $0x1f8] sm:$0xff]
    %384 = vmatpush.msra.mxu0 %v380
    %385 = vmatpush.msra.mxu0 %v376
    %386 = vmatpush.msra.mxu0 %v372
    %387 = vmatpush.msra.mxu0 %v368
    %388 = vmatpush.msra.mxu0 %v364
    %389 = vmatpush.msra.mxu0 %v360
    %390 = vmatpush.msra.mxu0 %v356
    %391 = vmatpush.msra.mxu0 %v352
    %392 = vmatpush.msra.mxu0 %v348
    %393 = vmatpush.msra.mxu0 %v344
    %394 = vmatpush.msra.mxu0 %v340
    %395 = vmatpush.msra.mxu0 %v336
    %396 = vmatpush.msra.mxu0 %v332
    %397 = vmatpush.msra.mxu0 %v328
    %398 = vmatpush.msra.mxu0 %v324
    %399 = vmatpush.msra.mxu0 %v320
    %400 = vmatmul.f32.gmra.mxu0 0.0
    %v401 = vpop.f32.mrf.mxu0
    %v402 = vadd.f32 0.0, %v401
    %403 = vdwg.mxu0
    %404 = vmatpush.msra.mxu0 %v381
    %405 = vmatpush.msra.mxu0 %v377
    %406 = vmatpush.msra.mxu0 %v373
    %407 = vmatpush.msra.mxu0 %v369
    %408 = vmatpush.msra.mxu0 %v365
    %409 = vmatpush.msra.mxu0 %v361
    %410 = vmatpush.msra.mxu0 %v357
    %411 = vmatpush.msra.mxu0 %v353
    %412 = vmatpush.msra.mxu0 %v349
    %413 = vmatpush.msra.mxu0 %v345
    %414 = vmatpush.msra.mxu0 %v341
    %415 = vmatpush.msra.mxu0 %v337
    %416 = vmatpush.msra.mxu0 %v333
    %417 = vmatpush.msra.mxu0 %v329
    %418 = vmatpush.msra.mxu0 %v325
    %419 = vmatpush.msra.mxu0 %v321
    %420 = vmatmul.f32.gmra.mxu0 0.0
    %v421 = vpop.f32.mrf.mxu0
    %v422 = vadd.f32 0.0, %v421
    %423 = vdwg.mxu0
    %424 = vmatpush.msra.mxu0 %v382
    %425 = vmatpush.msra.mxu0 %v378
    %426 = vmatpush.msra.mxu0 %v374
    %427 = vmatpush.msra.mxu0 %v370
    %428 = vmatpush.msra.mxu0 %v366
    %429 = vmatpush.msra.mxu0 %v362
    %430 = vmatpush.msra.mxu0 %v358
    %431 = vmatpush.msra.mxu0 %v354
    %432 = vmatpush.msra.mxu0 %v350
    %433 = vmatpush.msra.mxu0 %v346
    %434 = vmatpush.msra.mxu0 %v342
    %435 = vmatpush.msra.mxu0 %v338
    %436 = vmatpush.msra.mxu0 %v334
    %437 = vmatpush.msra.mxu0 %v330
    %438 = vmatpush.msra.mxu0 %v326
    %439 = vmatpush.msra.mxu0 %v322
    %440 = vmatmul.f32.gmra.mxu0 0.0
    %v441 = vpop.f32.mrf.mxu0
    %v442 = vadd.f32 0.0, %v441
    %443 = vdwg.mxu0
    %444 = vmatpush.msra.mxu0 %v383
    %445 = vmatpush.msra.mxu0 %v379
    %446 = vmatpush.msra.mxu0 %v375
    %447 = vmatpush.msra.mxu0 %v371
    %448 = vmatpush.msra.mxu0 %v367
    %449 = vmatpush.msra.mxu0 %v363
    %450 = vmatpush.msra.mxu0 %v359
    %451 = vmatpush.msra.mxu0 %v355
    %452 = vmatpush.msra.mxu0 %v351
    %453 = vmatpush.msra.mxu0 %v347
    %454 = vmatpush.msra.mxu0 %v343
    %455 = vmatpush.msra.mxu0 %v339
    %456 = vmatpush.msra.mxu0 %v335
    %457 = vmatpush.msra.mxu0 %v331
    %458 = vmatpush.msra.mxu0 %v327
    %459 = vmatpush.msra.mxu0 %v323
    %460 = vmatmul.f32.gmra.mxu0 0.0
    %v461 = vpop.f32.mrf.mxu0
    %v462 = vadd.f32 0.0, %v461
    %463 = vdwg.mxu0
    %v464 = vadd.f32 %v316, %v402
    %v465 = vadd.f32 %v317, %v422
    %v466 = vadd.f32 %v318, %v442
    %v467 = vadd.f32 %v319, %v462
    %v468 = vxor.u32 %v464, 2147483648
    %v469 = vmul.f32 %v468, 1.442695
    %v470 = vpow.pop %v469
    %v471 = vadd.f32 %v470, 1.0
    %v472 = vrcp.pop %v471
    %v473 = vmul.f32 %v471, %v472
    %v474 = vsub.f32 1.0, %v473
    %v475 = vmul.f32 %v472, %v474
    %v476 = vadd.f32 %v472, %v475
    %vm477 = vweird.f32 %v471
    %vm478 = vweird.f32 %v472
    %vm479 = vmor %vm477, %vm478
    %v480 = vsel %vm479, %v472, %v476
    %v481 = vand.u32 2147483647, %v471
    %vm482 = vcmp.eq.f32.partialorder %v481, 8.507059e+37
    %v483 = vand.u32 %v471, 2147483648
    %v484 = vor.u32 1.1754944e-38, %v483
    %v485 = vsel %vm482, %v484, %v480
    %v486 = vmul.f32 1.0, %v485
    %v487 = vxor.u32 %v465, 2147483648
    %v488 = vmul.f32 %v487, 1.442695
    %v489 = vpow.pop %v488
    %v490 = vadd.f32 %v489, 1.0
    %v491 = vrcp.pop %v490
    %v492 = vmul.f32 %v490, %v491
    %v493 = vsub.f32 1.0, %v492
    %v494 = vmul.f32 %v491, %v493
    %v495 = vadd.f32 %v491, %v494
    %vm496 = vweird.f32 %v490
    %vm497 = vweird.f32 %v491
    %vm498 = vmor %vm496, %vm497
    %v499 = vsel %vm498, %v491, %v495
    %v500 = vand.u32 2147483647, %v490
    %vm501 = vcmp.eq.f32.partialorder %v500, 8.507059e+37
    %v502 = vand.u32 %v490, 2147483648
    %v503 = vor.u32 1.1754944e-38, %v502
    %v504 = vsel %vm501, %v503, %v499
    %v505 = vmul.f32 1.0, %v504
    %v506 = vtanh.pop %v466
    %v507 = vxor.u32 %v467, 2147483648
    %v508 = vmul.f32 %v507, 1.442695
    %v509 = vpow.pop %v508
    %v510 = vadd.f32 %v509, 1.0
    %v511 = vrcp.pop %v510
    %v512 = vmul.f32 %v510, %v511
    %v513 = vsub.f32 1.0, %v512
    %v514 = vmul.f32 %v511, %v513
    %v515 = vadd.f32 %v511, %v514
    %vm516 = vweird.f32 %v510
    %vm517 = vweird.f32 %v511
    %vm518 = vmor %vm516, %vm517
    %v519 = vsel %vm518, %v511, %v515
    %v520 = vand.u32 2147483647, %v510
    %vm521 = vcmp.eq.f32.partialorder %v520, 8.507059e+37
    %v522 = vand.u32 %v510, 2147483648
    %v523 = vor.u32 1.1754944e-38, %v522
    %v524 = vsel %vm521, %v523, %v519
    %v525 = vmul.f32 1.0, %v524
    %v526 = vmul.f32 %v505, 0.0
    %v527 = vmul.f32 %v486, %v506
    %v528 = vadd.f32 %v526, %v527
    %v529 = vtanh.pop %v528
    %v530 = vmul.f32 %v525, %v529
    %vm531 = vcmp.gt.s32.totalorder %v312, 0
    %v532 = vsel %vm531, 1, 0
    %533 = vset.pattern.permute.xlu0 0
    %534 = vperm.xlu0 %533, %v532
    %v535 = vpop.permute.xlu0 %534
    %vm536 = vcmp.eq.s32.totalorder %v535, 1
    %v537 = vsel %vm536, %v530, 0.0
    %s538 = smul.u32 1, 4
    %s539 = smul.addr %s538, 8
    %s540 = scalar_lea.vmem [#allocation2], %s539
    %v541 = vld [vmem:[%s540] sm:$0xff]
    %v542 = vld [vmem:[%s540 + $0x8] sm:$0xff]
    %v543 = vld [vmem:[%s540 + $0x10] sm:$0xff]
    %v544 = vld [vmem:[%s540 + $0x18] sm:$0xff]
    %545 = vmatpush.msra.mxu0 %v380
    %546 = vmatpush.msra.mxu0 %v376
    %547 = vmatpush.msra.mxu0 %v372
    %548 = vmatpush.msra.mxu0 %v368
    %549 = vmatpush.msra.mxu0 %v364
    %550 = vmatpush.msra.mxu0 %v360
    %551 = vmatpush.msra.mxu0 %v356
    %552 = vmatpush.msra.mxu0 %v352
    %553 = vmatpush.msra.mxu0 %v348
    %554 = vmatpush.msra.mxu0 %v344
    %555 = vmatpush.msra.mxu0 %v340
    %556 = vmatpush.msra.mxu0 %v336
    %557 = vmatpush.msra.mxu0 %v332
    %558 = vmatpush.msra.mxu0 %v328
    %559 = vmatpush.msra.mxu0 %v324
    %560 = vmatpush.msra.mxu0 %v320
    %561 = vmatmul.f32.gmra.mxu0 %v537
    %v562 = vpop.f32.mrf.mxu0
    %v563 = vadd.f32 0.0, %v562
    %564 = vdwg.mxu0
    %565 = vmatpush.msra.mxu0 %v381
    %566 = vmatpush.msra.mxu0 %v377
    %567 = vmatpush.msra.mxu0 %v373
    %568 = vmatpush.msra.mxu0 %v369
    %569 = vmatpush.msra.mxu0 %v365
    %570 = vmatpush.msra.mxu0 %v361
    %571 = vmatpush.msra.mxu0 %v357
    %572 = vmatpush.msra.mxu0 %v353
    %573 = vmatpush.msra.mxu0 %v349
    %574 = vmatpush.msra.mxu0 %v345
    %575 = vmatpush.msra.mxu0 %v341
    %576 = vmatpush.msra.mxu0 %v337
    %577 = vmatpush.msra.mxu0 %v333
    %578 = vmatpush.msra.mxu0 %v329
    %579 = vmatpush.msra.mxu0 %v325
    %580 = vmatpush.msra.mxu0 %v321
    %581 = vmatmul.f32.gmra.mxu0 %v537
    %v582 = vpop.f32.mrf.mxu0
    %v583 = vadd.f32 0.0, %v582
    %584 = vdwg.mxu0
    %585 = vmatpush.msra.mxu0 %v382
    %586 = vmatpush.msra.mxu0 %v378
    %587 = vmatpush.msra.mxu0 %v374
    %588 = vmatpush.msra.mxu0 %v370
    %589 = vmatpush.msra.mxu0 %v366
    %590 = vmatpush.msra.mxu0 %v362
    %591 = vmatpush.msra.mxu0 %v358
    %592 = vmatpush.msra.mxu0 %v354
    %593 = vmatpush.msra.mxu0 %v350
    %594 = vmatpush.msra.mxu0 %v346
    %595 = vmatpush.msra.mxu0 %v342
    %596 = vmatpush.msra.mxu0 %v338
    %597 = vmatpush.msra.mxu0 %v334
    %598 = vmatpush.msra.mxu0 %v330
    %599 = vmatpush.msra.mxu0 %v326
    %600 = vmatpush.msra.mxu0 %v322
    %601 = vmatmul.f32.gmra.mxu0 %v537
    %v602 = vpop.f32.mrf.mxu0
    %v603 = vadd.f32 0.0, %v602
    %604 = vdwg.mxu0
    %605 = vmatpush.msra.mxu0 %v383
    %606 = vmatpush.msra.mxu0 %v379
    %607 = vmatpush.msra.mxu0 %v375
    %608 = vmatpush.msra.mxu0 %v371
    %609 = vmatpush.msra.mxu0 %v367
    %610 = vmatpush.msra.mxu0 %v363
    %611 = vmatpush.msra.mxu0 %v359
    %612 = vmatpush.msra.mxu0 %v355
    %613 = vmatpush.msra.mxu0 %v351
    %614 = vmatpush.msra.mxu0 %v347
    %615 = vmatpush.msra.mxu0 %v343
    %616 = vmatpush.msra.mxu0 %v339
    %617 = vmatpush.msra.mxu0 %v335
    %618 = vmatpush.msra.mxu0 %v331
    %619 = vmatpush.msra.mxu0 %v327
    %620 = vmatpush.msra.mxu0 %v323
    %621 = vmatmul.f32.gmra.mxu0 %v537
    %v622 = vpop.f32.mrf.mxu0
    %v623 = vadd.f32 0.0, %v622
    %624 = vdwg.mxu0
    %v625 = vadd.f32 %v541, %v563
    %v626 = vadd.f32 %v542, %v583
    %v627 = vadd.f32 %v543, %v603
    %v628 = vadd.f32 %v544, %v623
    %v629 = vxor.u32 %v625, 2147483648
    %v630 = vmul.f32 %v629, 1.442695
    %v631 = vpow.pop %v630
    %v632 = vadd.f32 %v631, 1.0
    %v633 = vrcp.pop %v632
    %v634 = vmul.f32 %v632, %v633
    %v635 = vsub.f32 1.0, %v634
    %v636 = vmul.f32 %v633, %v635
    %v637 = vadd.f32 %v633, %v636
    %vm638 = vweird.f32 %v632
    %vm639 = vweird.f32 %v633
    %vm640 = vmor %vm638, %vm639
    %v641 = vsel %vm640, %v633, %v637
    %v642 = vand.u32 2147483647, %v632
    %vm643 = vcmp.eq.f32.partialorder %v642, 8.507059e+37
    %v644 = vand.u32 %v632, 2147483648
    %v645 = vor.u32 1.1754944e-38, %v644
    %v646 = vsel %vm643, %v645, %v641
    %v647 = vmul.f32 1.0, %v646
    %v648 = vxor.u32 %v626, 2147483648
    %v649 = vmul.f32 %v648, 1.442695
    %v650 = vpow.pop %v649
    %v651 = vadd.f32 %v650, 1.0
    %v652 = vrcp.pop %v651
    %v653 = vmul.f32 %v651, %v652
    %v654 = vsub.f32 1.0, %v653
    %v655 = vmul.f32 %v652, %v654
    %v656 = vadd.f32 %v652, %v655
    %vm657 = vweird.f32 %v651
    %vm658 = vweird.f32 %v652
    %vm659 = vmor %vm657, %vm658
    %v660 = vsel %vm659, %v652, %v656
    %v661 = vand.u32 2147483647, %v651
    %vm662 = vcmp.eq.f32.partialorder %v661, 8.507059e+37
    %v663 = vand.u32 %v651, 2147483648
    %v664 = vor.u32 1.1754944e-38, %v663
    %v665 = vsel %vm662, %v664, %v660
    %v666 = vmul.f32 1.0, %v665
    %v667 = vtanh.pop %v627
    %v668 = vxor.u32 %v628, 2147483648
    %v669 = vmul.f32 %v668, 1.442695
    %v670 = vpow.pop %v669
    %v671 = vadd.f32 %v670, 1.0
    %v672 = vrcp.pop %v671
    %v673 = vmul.f32 %v671, %v672
    %v674 = vsub.f32 1.0, %v673
    %v675 = vmul.f32 %v672, %v674
    %v676 = vadd.f32 %v672, %v675
    %vm677 = vweird.f32 %v671
    %vm678 = vweird.f32 %v672
    %vm679 = vmor %vm677, %vm678
    %v680 = vsel %vm679, %v672, %v676
    %v681 = vand.u32 2147483647, %v671
    %vm682 = vcmp.eq.f32.partialorder %v681, 8.507059e+37
    %v683 = vand.u32 %v671, 2147483648
    %v684 = vor.u32 1.1754944e-38, %v683
    %v685 = vsel %vm682, %v684, %v680
    %v686 = vmul.f32 1.0, %v685
    %v687 = vmul.f32 %v666, %v528
    %v688 = vmul.f32 %v647, %v667
    %v689 = vadd.f32 %v687, %v688
    %v690 = vtanh.pop %v689
    %v691 = vmul.f32 %v686, %v690
    %vm692 = vcmp.gt.s32.totalorder %v312, 1
    %v693 = vsel %vm692, 1, 0
    %694 = vset.pattern.permute.xlu0 0
    %695 = vperm.xlu0 %694, %v693
    %v696 = vpop.permute.xlu0 %695
    %vm697 = vcmp.eq.s32.totalorder %v696, 1
    %v698 = vsel %vm697, %v691, %v537
    %s699 = smul.u32 2, 4
    %s700 = smul.addr %s699, 8
    %s701 = scalar_lea.vmem [#allocation2], %s700
    %v702 = vld [vmem:[%s701] sm:$0xff]
    %v703 = vld [vmem:[%s701 + $0x8] sm:$0xff]
    %v704 = vld [vmem:[%s701 + $0x10] sm:$0xff]
    %v705 = vld [vmem:[%s701 + $0x18] sm:$0xff]
    %706 = vmatpush.msra.mxu0 %v380
    %707 = vmatpush.msra.mxu0 %v376
    %708 = vmatpush.msra.mxu0 %v372
    %709 = vmatpush.msra.mxu0 %v368
    %710 = vmatpush.msra.mxu0 %v364
    %711 = vmatpush.msra.mxu0 %v360
    %712 = vmatpush.msra.mxu0 %v356
    %713 = vmatpush.msra.mxu0 %v352
    %714 = vmatpush.msra.mxu0 %v348
    %715 = vmatpush.msra.mxu0 %v344
    %716 = vmatpush.msra.mxu0 %v340
    %717 = vmatpush.msra.mxu0 %v336
    %718 = vmatpush.msra.mxu0 %v332
    %719 = vmatpush.msra.mxu0 %v328
    %720 = vmatpush.msra.mxu0 %v324
    %721 = vmatpush.msra.mxu0 %v320
    %722 = vmatmul.f32.gmra.mxu0 %v698
    %v723 = vpop.f32.mrf.mxu0
    %v724 = vadd.f32 0.0, %v723
    %725 = vdwg.mxu0
    %726 = vmatpush.msra.mxu0 %v381
    %727 = vmatpush.msra.mxu0 %v377
    %728 = vmatpush.msra.mxu0 %v373
    %729 = vmatpush.msra.mxu0 %v369
    %730 = vmatpush.msra.mxu0 %v365
    %731 = vmatpush.msra.mxu0 %v361
    %732 = vmatpush.msra.mxu0 %v357
    %733 = vmatpush.msra.mxu0 %v353
    %734 = vmatpush.msra.mxu0 %v349
    %735 = vmatpush.msra.mxu0 %v345
    %736 = vmatpush.msra.mxu0 %v341
    %737 = vmatpush.msra.mxu0 %v337
    %738 = vmatpush.msra.mxu0 %v333
    %739 = vmatpush.msra.mxu0 %v329
    %740 = vmatpush.msra.mxu0 %v325
    %741 = vmatpush.msra.mxu0 %v321
    %742 = vmatmul.f32.gmra.mxu0 %v698
    %v743 = vpop.f32.mrf.mxu0
    %v744 = vadd.f32 0.0, %v743
    %745 = vdwg.mxu0
    %746 = vmatpush.msra.mxu0 %v382
    %747 = vmatpush.msra.mxu0 %v378
    %748 = vmatpush.msra.mxu0 %v374
    %749 = vmatpush.msra.mxu0 %v370
    %750 = vmatpush.msra.mxu0 %v366
    %751 = vmatpush.msra.mxu0 %v362
    %752 = vmatpush.msra.mxu0 %v358
    %753 = vmatpush.msra.mxu0 %v354
    %754 = vmatpush.msra.mxu0 %v350
    %755 = vmatpush.msra.mxu0 %v346
    %756 = vmatpush.msra.mxu0 %v342
    %757 = vmatpush.msra.mxu0 %v338
    %758 = vmatpush.msra.mxu0 %v334
    %759 = vmatpush.msra.mxu0 %v330
    %760 = vmatpush.msra.mxu0 %v326
    %761 = vmatpush.msra.mxu0 %v322
    %762 = vmatmul.f32.gmra.mxu0 %v698
    %v763 = vpop.f32.mrf.mxu0
    %v764 = vadd.f32 0.0, %v763
    %765 = vdwg.mxu0
    %766 = vmatpush.msra.mxu0 %v383
    %767 = vmatpush.msra.mxu0 %v379
    %768 = vmatpush.msra.mxu0 %v375
    %769 = vmatpush.msra.mxu0 %v371
    %770 = vmatpush.msra.mxu0 %v367
    %771 = vmatpush.msra.mxu0 %v363
    %772 = vmatpush.msra.mxu0 %v359
    %773 = vmatpush.msra.mxu0 %v355
    %774 = vmatpush.msra.mxu0 %v351
    %775 = vmatpush.msra.mxu0 %v347
    %776 = vmatpush.msra.mxu0 %v343
    %777 = vmatpush.msra.mxu0 %v339
    %778 = vmatpush.msra.mxu0 %v335
    %779 = vmatpush.msra.mxu0 %v331
    %780 = vmatpush.msra.mxu0 %v327
    %781 = vmatpush.msra.mxu0 %v323
    %782 = vmatmul.f32.gmra.mxu0 %v698
    %v783 = vpop.f32.mrf.mxu0
    %v784 = vadd.f32 0.0, %v783
    %785 = vdwg.mxu0
    %v786 = vadd.f32 %v702, %v724
    %v787 = vadd.f32 %v703, %v744
    %v788 = vadd.f32 %v704, %v764
    %v789 = vadd.f32 %v705, %v784
    %v790 = vxor.u32 %v786, 2147483648
    %v791 = vmul.f32 %v790, 1.442695
    %v792 = vpow.pop %v791
    %v793 = vadd.f32 %v792, 1.0
    %v794 = vrcp.pop %v793
    %v795 = vmul.f32 %v793, %v794
    %v796 = vsub.f32 1.0, %v795
    %v797 = vmul.f32 %v794, %v796
    %v798 = vadd.f32 %v794, %v797
    %vm799 = vweird.f32 %v793
    %vm800 = vweird.f32 %v794
    %vm801 = vmor %vm799, %vm800
    %v802 = vsel %vm801, %v794, %v798
    %v803 = vand.u32 2147483647, %v793
    %vm804 = vcmp.eq.f32.partialorder %v803, 8.507059e+37
    %v805 = vand.u32 %v793, 2147483648
    %v806 = vor.u32 1.1754944e-38, %v805
    %v807 = vsel %vm804, %v806, %v802
    %v808 = vmul.f32 1.0, %v807
    %v809 = vxor.u32 %v787, 2147483648
    %v810 = vmul.f32 %v809, 1.442695
    %v811 = vpow.pop %v810
    %v812 = vadd.f32 %v811, 1.0
    %v813 = vrcp.pop %v812
    %v814 = vmul.f32 %v812, %v813
    %v815 = vsub.f32 1.0, %v814
    %v816 = vmul.f32 %v813, %v815
    %v817 = vadd.f32 %v813, %v816
    %vm818 = vweird.f32 %v812
    %vm819 = vweird.f32 %v813
    %vm820 = vmor %vm818, %vm819
    %v821 = vsel %vm820, %v813, %v817
    %v822 = vand.u32 2147483647, %v812
    %vm823 = vcmp.eq.f32.partialorder %v822, 8.507059e+37
    %v824 = vand.u32 %v812, 2147483648
    %v825 = vor.u32 1.1754944e-38, %v824
    %v826 = vsel %vm823, %v825, %v821
    %v827 = vmul.f32 1.0, %v826
    %v828 = vtanh.pop %v788
    %v829 = vxor.u32 %v789, 2147483648
    %v830 = vmul.f32 %v829, 1.442695
    %v831 = vpow.pop %v830
    %v832 = vadd.f32 %v831, 1.0
    %v833 = vrcp.pop %v832
    %v834 = vmul.f32 %v832, %v833
    %v835 = vsub.f32 1.0, %v834
    %v836 = vmul.f32 %v833, %v835
    %v837 = vadd.f32 %v833, %v836
    %vm838 = vweird.f32 %v832
    %vm839 = vweird.f32 %v833
    %vm840 = vmor %vm838, %vm839
    %v841 = vsel %vm840, %v833, %v837
    %v842 = vand.u32 2147483647, %v832
    %vm843 = vcmp.eq.f32.partialorder %v842, 8.507059e+37
    %v844 = vand.u32 %v832, 2147483648
    %v845 = vor.u32 1.1754944e-38, %v844
    %v846 = vsel %vm843, %v845, %v841
    %v847 = vmul.f32 1.0, %v846
    %v848 = vmul.f32 %v827, %v689
    %v849 = vmul.f32 %v808, %v828
    %v850 = vadd.f32 %v848, %v849
    %v851 = vtanh.pop %v850
    %v852 = vmul.f32 %v847, %v851
    %vm853 = vcmp.gt.s32.totalorder %v312, 2
    %v854 = vsel %vm853, 1, 0
    %855 = vset.pattern.permute.xlu0 0
    %856 = vperm.xlu0 %855, %v854
    %v857 = vpop.permute.xlu0 %856
    %vm858 = vcmp.eq.s32.totalorder %v857, 1
    %v859 = vsel %vm858, %v852, %v698
    %s860 = smul.u32 3, 4
    %s861 = smul.addr %s860, 8
    %s862 = scalar_lea.vmem [#allocation2], %s861
    %v863 = vld [vmem:[%s862] sm:$0xff]
    %v864 = vld [vmem:[%s862 + $0x8] sm:$0xff]
    %v865 = vld [vmem:[%s862 + $0x10] sm:$0xff]
    %v866 = vld [vmem:[%s862 + $0x18] sm:$0xff]
    %867 = vmatpush.msra.mxu0 %v380
    %868 = vmatpush.msra.mxu0 %v376
    %869 = vmatpush.msra.mxu0 %v372
    %870 = vmatpush.msra.mxu0 %v368
    %871 = vmatpush.msra.mxu0 %v364
    %872 = vmatpush.msra.mxu0 %v360
    %873 = vmatpush.msra.mxu0 %v356
    %874 = vmatpush.msra.mxu0 %v352
    %875 = vmatpush.msra.mxu0 %v348
    %876 = vmatpush.msra.mxu0 %v344
    %877 = vmatpush.msra.mxu0 %v340
    %878 = vmatpush.msra.mxu0 %v336
    %879 = vmatpush.msra.mxu0 %v332
    %880 = vmatpush.msra.mxu0 %v328
    %881 = vmatpush.msra.mxu0 %v324
    %882 = vmatpush.msra.mxu0 %v320
    %883 = vmatmul.f32.gmra.mxu0 %v859
    %v884 = vpop.f32.mrf.mxu0
    %v885 = vadd.f32 0.0, %v884
    %886 = vdwg.mxu0
    %887 = vmatpush.msra.mxu0 %v381
    %888 = vmatpush.msra.mxu0 %v377
    %889 = vmatpush.msra.mxu0 %v373
    %890 = vmatpush.msra.mxu0 %v369
    %891 = vmatpush.msra.mxu0 %v365
    %892 = vmatpush.msra.mxu0 %v361
    %893 = vmatpush.msra.mxu0 %v357
    %894 = vmatpush.msra.mxu0 %v353
    %895 = vmatpush.msra.mxu0 %v349
    %896 = vmatpush.msra.mxu0 %v345
    %897 = vmatpush.msra.mxu0 %v341
    %898 = vmatpush.msra.mxu0 %v337
    %899 = vmatpush.msra.mxu0 %v333
    %900 = vmatpush.msra.mxu0 %v329
    %901 = vmatpush.msra.mxu0 %v325
    %902 = vmatpush.msra.mxu0 %v321
    %903 = vmatmul.f32.gmra.mxu0 %v859
    %v904 = vpop.f32.mrf.mxu0
    %v905 = vadd.f32 0.0, %v904
    %906 = vdwg.mxu0
    %907 = vmatpush.msra.mxu0 %v382
    %908 = vmatpush.msra.mxu0 %v378
    %909 = vmatpush.msra.mxu0 %v374
    %910 = vmatpush.msra.mxu0 %v370
    %911 = vmatpush.msra.mxu0 %v366
    %912 = vmatpush.msra.mxu0 %v362
    %913 = vmatpush.msra.mxu0 %v358
    %914 = vmatpush.msra.mxu0 %v354
    %915 = vmatpush.msra.mxu0 %v350
    %916 = vmatpush.msra.mxu0 %v346
    %917 = vmatpush.msra.mxu0 %v342
    %918 = vmatpush.msra.mxu0 %v338
    %919 = vmatpush.msra.mxu0 %v334
    %920 = vmatpush.msra.mxu0 %v330
    %921 = vmatpush.msra.mxu0 %v326
    %922 = vmatpush.msra.mxu0 %v322
    %923 = vmatmul.f32.gmra.mxu0 %v859
    %v924 = vpop.f32.mrf.mxu0
    %v925 = vadd.f32 0.0, %v924
    %926 = vdwg.mxu0
    %927 = vmatpush.msra.mxu0 %v383
    %928 = vmatpush.msra.mxu0 %v379
    %929 = vmatpush.msra.mxu0 %v375
    %930 = vmatpush.msra.mxu0 %v371
    %931 = vmatpush.msra.mxu0 %v367
    %932 = vmatpush.msra.mxu0 %v363
    %933 = vmatpush.msra.mxu0 %v359
    %934 = vmatpush.msra.mxu0 %v355
    %935 = vmatpush.msra.mxu0 %v351
    %936 = vmatpush.msra.mxu0 %v347
    %937 = vmatpush.msra.mxu0 %v343
    %938 = vmatpush.msra.mxu0 %v339
    %939 = vmatpush.msra.mxu0 %v335
    %940 = vmatpush.msra.mxu0 %v331
    %941 = vmatpush.msra.mxu0 %v327
    %942 = vmatpush.msra.mxu0 %v323
    %943 = vmatmul.f32.gmra.mxu0 %v859
    %v944 = vpop.f32.mrf.mxu0
    %v945 = vadd.f32 0.0, %v944
    %946 = vdwg.mxu0
    %v947 = vadd.f32 %v863, %v885
    %v948 = vadd.f32 %v864, %v905
    %v949 = vadd.f32 %v865, %v925
    %v950 = vadd.f32 %v866, %v945
    %v951 = vxor.u32 %v947, 2147483648
    %v952 = vmul.f32 %v951, 1.442695
    %v953 = vpow.pop %v952
    %v954 = vadd.f32 %v953, 1.0
    %v955 = vrcp.pop %v954
    %v956 = vmul.f32 %v954, %v955
    %v957 = vsub.f32 1.0, %v956
    %v958 = vmul.f32 %v955, %v957
    %v959 = vadd.f32 %v955, %v958
    %vm960 = vweird.f32 %v954
    %vm961 = vweird.f32 %v955
    %vm962 = vmor %vm960, %vm961
    %v963 = vsel %vm962, %v955, %v959
    %v964 = vand.u32 2147483647, %v954
    %vm965 = vcmp.eq.f32.partialorder %v964, 8.507059e+37
    %v966 = vand.u32 %v954, 2147483648
    %v967 = vor.u32 1.1754944e-38, %v966
    %v968 = vsel %vm965, %v967, %v963
    %v969 = vmul.f32 1.0, %v968
    %v970 = vxor.u32 %v948, 2147483648
    %v971 = vmul.f32 %v970, 1.442695
    %v972 = vpow.pop %v971
    %v973 = vadd.f32 %v972, 1.0
    %v974 = vrcp.pop %v973
    %v975 = vmul.f32 %v973, %v974
    %v976 = vsub.f32 1.0, %v975
    %v977 = vmul.f32 %v974, %v976
    %v978 = vadd.f32 %v974, %v977
    %vm979 = vweird.f32 %v973
    %vm980 = vweird.f32 %v974
    %vm981 = vmor %vm979, %vm980
    %v982 = vsel %vm981, %v974, %v978
    %v983 = vand.u32 2147483647, %v973
    %vm984 = vcmp.eq.f32.partialorder %v983, 8.507059e+37
    %v985 = vand.u32 %v973, 2147483648
    %v986 = vor.u32 1.1754944e-38, %v985
    %v987 = vsel %vm984, %v986, %v982
    %v988 = vmul.f32 1.0, %v987
    %v989 = vtanh.pop %v949
    %v990 = vxor.u32 %v950, 2147483648
    %v991 = vmul.f32 %v990, 1.442695
    %v992 = vpow.pop %v991
    %v993 = vadd.f32 %v992, 1.0
    %v994 = vrcp.pop %v993
    %v995 = vmul.f32 %v993, %v994
    %v996 = vsub.f32 1.0, %v995
    %v997 = vmul.f32 %v994, %v996
    %v998 = vadd.f32 %v994, %v997
    %vm999 = vweird.f32 %v993
    %vm1000 = vweird.f32 %v994
    %vm1001 = vmor %vm999, %vm1000
    %v1002 = vsel %vm1001, %v994, %v998
    %v1003 = vand.u32 2147483647, %v993
    %vm1004 = vcmp.eq.f32.partialorder %v1003, 8.507059e+37
    %v1005 = vand.u32 %v993, 2147483648
    %v1006 = vor.u32 1.1754944e-38, %v1005
    %v1007 = vsel %vm1004, %v1006, %v1002
    %v1008 = vmul.f32 1.0, %v1007
    %v1009 = vmul.f32 %v988, %v850
    %v1010 = vmul.f32 %v969, %v989
    %v1011 = vadd.f32 %v1009, %v1010
    %v1012 = vtanh.pop %v1011
    %v1013 = vmul.f32 %v1008, %v1012
    %vm1014 = vcmp.gt.s32.totalorder %v312, 3
    %v1015 = vsel %vm1014, 1, 0
    %1016 = vset.pattern.permute.xlu0 0
    %1017 = vperm.xlu0 %1016, %v1015
    %v1018 = vpop.permute.xlu0 %1017
    %vm1019 = vcmp.eq.s32.totalorder %v1018, 1
    %v1020 = vsel %vm1019, %v1013, %v859
    %s1021 = smul.u32 4, 4
    %s1022 = smul.addr %s1021, 8
    %s1023 = scalar_lea.vmem [#allocation2], %s1022
    %v1024 = vld [vmem:[%s1023] sm:$0xff]
    %v1025 = vld [vmem:[%s1023 + $0x8] sm:$0xff]
    %v1026 = vld [vmem:[%s1023 + $0x10] sm:$0xff]
    %v1027 = vld [vmem:[%s1023 + $0x18] sm:$0xff]
    %1028 = vmatpush.msra.mxu0 %v380
    %1029 = vmatpush.msra.mxu0 %v376
    %1030 = vmatpush.msra.mxu0 %v372
    %1031 = vmatpush.msra.mxu0 %v368
    %1032 = vmatpush.msra.mxu0 %v364
    %1033 = vmatpush.msra.mxu0 %v360
    %1034 = vmatpush.msra.mxu0 %v356
    %1035 = vmatpush.msra.mxu0 %v352
    %1036 = vmatpush.msra.mxu0 %v348
    %1037 = vmatpush.msra.mxu0 %v344
    %1038 = vmatpush.msra.mxu0 %v340
    %1039 = vmatpush.msra.mxu0 %v336
    %1040 = vmatpush.msra.mxu0 %v332
    %1041 = vmatpush.msra.mxu0 %v328
    %1042 = vmatpush.msra.mxu0 %v324
    %1043 = vmatpush.msra.mxu0 %v320
    %1044 = vmatmul.f32.gmra.mxu0 %v1020
    %v1045 = vpop.f32.mrf.mxu0
    %v1046 = vadd.f32 0.0, %v1045
    %1047 = vdwg.mxu0
    %1048 = vmatpush.msra.mxu0 %v381
    %1049 = vmatpush.msra.mxu0 %v377
    %1050 = vmatpush.msra.mxu0 %v373
    %1051 = vmatpush.msra.mxu0 %v369
    %1052 = vmatpush.msra.mxu0 %v365
    %1053 = vmatpush.msra.mxu0 %v361
    %1054 = vmatpush.msra.mxu0 %v357
    %1055 = vmatpush.msra.mxu0 %v353
    %1056 = vmatpush.msra.mxu0 %v349
    %1057 = vmatpush.msra.mxu0 %v345
    %1058 = vmatpush.msra.mxu0 %v341
    %1059 = vmatpush.msra.mxu0 %v337
    %1060 = vmatpush.msra.mxu0 %v333
    %1061 = vmatpush.msra.mxu0 %v329
    %1062 = vmatpush.msra.mxu0 %v325
    %1063 = vmatpush.msra.mxu0 %v321
    %1064 = vmatmul.f32.gmra.mxu0 %v1020
    %v1065 = vpop.f32.mrf.mxu0
    %v1066 = vadd.f32 0.0, %v1065
    %1067 = vdwg.mxu0
    %1068 = vmatpush.msra.mxu0 %v382
    %1069 = vmatpush.msra.mxu0 %v378
    %1070 = vmatpush.msra.mxu0 %v374
    %1071 = vmatpush.msra.mxu0 %v370
    %1072 = vmatpush.msra.mxu0 %v366
    %1073 = vmatpush.msra.mxu0 %v362
    %1074 = vmatpush.msra.mxu0 %v358
    %1075 = vmatpush.msra.mxu0 %v354
    %1076 = vmatpush.msra.mxu0 %v350
    %1077 = vmatpush.msra.mxu0 %v346
    %1078 = vmatpush.msra.mxu0 %v342
    %1079 = vmatpush.msra.mxu0 %v338
    %1080 = vmatpush.msra.mxu0 %v334
    %1081 = vmatpush.msra.mxu0 %v330
    %1082 = vmatpush.msra.mxu0 %v326
    %1083 = vmatpush.msra.mxu0 %v322
    %1084 = vmatmul.f32.gmra.mxu0 %v1020
    %v1085 = vpop.f32.mrf.mxu0
    %v1086 = vadd.f32 0.0, %v1085
    %1087 = vdwg.mxu0
    %1088 = vmatpush.msra.mxu0 %v383
    %1089 = vmatpush.msra.mxu0 %v379
    %1090 = vmatpush.msra.mxu0 %v375
    %1091 = vmatpush.msra.mxu0 %v371
    %1092 = vmatpush.msra.mxu0 %v367
    %1093 = vmatpush.msra.mxu0 %v363
    %1094 = vmatpush.msra.mxu0 %v359
    %1095 = vmatpush.msra.mxu0 %v355
    %1096 = vmatpush.msra.mxu0 %v351
    %1097 = vmatpush.msra.mxu0 %v347
    %1098 = vmatpush.msra.mxu0 %v343
    %1099 = vmatpush.msra.mxu0 %v339
    %1100 = vmatpush.msra.mxu0 %v335
    %1101 = vmatpush.msra.mxu0 %v331
    %1102 = vmatpush.msra.mxu0 %v327
    %1103 = vmatpush.msra.mxu0 %v323
    %1104 = vmatmul.f32.gmra.mxu0 %v1020
    %v1105 = vpop.f32.mrf.mxu0
    %v1106 = vadd.f32 0.0, %v1105
    %1107 = vdwg.mxu0
    %v1108 = vadd.f32 %v1024, %v1046
    %v1109 = vadd.f32 %v1025, %v1066
    %v1110 = vadd.f32 %v1026, %v1086
    %v1111 = vadd.f32 %v1027, %v1106
    %v1112 = vxor.u32 %v1108, 2147483648
    %v1113 = vmul.f32 %v1112, 1.442695
    %v1114 = vpow.pop %v1113
    %v1115 = vadd.f32 %v1114, 1.0
    %v1116 = vrcp.pop %v1115
    %v1117 = vmul.f32 %v1115, %v1116
    %v1118 = vsub.f32 1.0, %v1117
    %v1119 = vmul.f32 %v1116, %v1118
    %v1120 = vadd.f32 %v1116, %v1119
    %vm1121 = vweird.f32 %v1115
    %vm1122 = vweird.f32 %v1116
    %vm1123 = vmor %vm1121, %vm1122
    %v1124 = vsel %vm1123, %v1116, %v1120
    %v1125 = vand.u32 2147483647, %v1115
    %vm1126 = vcmp.eq.f32.partialorder %v1125, 8.507059e+37
    %v1127 = vand.u32 %v1115, 2147483648
    %v1128 = vor.u32 1.1754944e-38, %v1127
    %v1129 = vsel %vm1126, %v1128, %v1124
    %v1130 = vmul.f32 1.0, %v1129
    %v1131 = vxor.u32 %v1109, 2147483648
    %v1132 = vmul.f32 %v1131, 1.442695
    %v1133 = vpow.pop %v1132
    %v1134 = vadd.f32 %v1133, 1.0
    %v1135 = vrcp.pop %v1134
    %v1136 = vmul.f32 %v1134, %v1135
    %v1137 = vsub.f32 1.0, %v1136
    %v1138 = vmul.f32 %v1135, %v1137
    %v1139 = vadd.f32 %v1135, %v1138
    %vm1140 = vweird.f32 %v1134
    %vm1141 = vweird.f32 %v1135
    %vm1142 = vmor %vm1140, %vm1141
    %v1143 = vsel %vm1142, %v1135, %v1139
    %v1144 = vand.u32 2147483647, %v1134
    %vm1145 = vcmp.eq.f32.partialorder %v1144, 8.507059e+37
    %v1146 = vand.u32 %v1134, 2147483648
    %v1147 = vor.u32 1.1754944e-38, %v1146
    %v1148 = vsel %vm1145, %v1147, %v1143
    %v1149 = vmul.f32 1.0, %v1148
    %v1150 = vtanh.pop %v1110
    %v1151 = vxor.u32 %v1111, 2147483648
    %v1152 = vmul.f32 %v1151, 1.442695
    %v1153 = vpow.pop %v1152
    %v1154 = vadd.f32 %v1153, 1.0
    %v1155 = vrcp.pop %v1154
    %v1156 = vmul.f32 %v1154, %v1155
    %v1157 = vsub.f32 1.0, %v1156
    %v1158 = vmul.f32 %v1155, %v1157
    %v1159 = vadd.f32 %v1155, %v1158
    %vm1160 = vweird.f32 %v1154
    %vm1161 = vweird.f32 %v1155
    %vm1162 = vmor %vm1160, %vm1161
    %v1163 = vsel %vm1162, %v1155, %v1159
    %v1164 = vand.u32 2147483647, %v1154
    %vm1165 = vcmp.eq.f32.partialorder %v1164, 8.507059e+37
    %v1166 = vand.u32 %v1154, 2147483648
    %v1167 = vor.u32 1.1754944e-38, %v1166
    %v1168 = vsel %vm1165, %v1167, %v1163
    %v1169 = vmul.f32 1.0, %v1168
    %v1170 = vmul.f32 %v1149, %v1011
    %v1171 = vmul.f32 %v1130, %v1150
    %v1172 = vadd.f32 %v1170, %v1171
    %v1173 = vtanh.pop %v1172
    %v1174 = vmul.f32 %v1169, %v1173
    %vm1175 = vcmp.gt.s32.totalorder %v312, 4
    %v1176 = vsel %vm1175, 1, 0
    %1177 = vset.pattern.permute.xlu0 0
    %1178 = vperm.xlu0 %1177, %v1176
    %v1179 = vpop.permute.xlu0 %1178
    %vm1180 = vcmp.eq.s32.totalorder %v1179, 1
    %v1181 = vsel %vm1180, %v1174, %v1020
    %s1182 = smul.u32 5, 4
    %s1183 = smul.addr %s1182, 8
    %s1184 = scalar_lea.vmem [#allocation2], %s1183
    %v1185 = vld [vmem:[%s1184] sm:$0xff]
    %v1186 = vld [vmem:[%s1184 + $0x8] sm:$0xff]
    %v1187 = vld [vmem:[%s1184 + $0x10] sm:$0xff]
    %v1188 = vld [vmem:[%s1184 + $0x18] sm:$0xff]
    %1189 = vmatpush.msra.mxu0 %v380
    %1190 = vmatpush.msra.mxu0 %v376
    %1191 = vmatpush.msra.mxu0 %v372
    %1192 = vmatpush.msra.mxu0 %v368
    %1193 = vmatpush.msra.mxu0 %v364
    %1194 = vmatpush.msra.mxu0 %v360
    %1195 = vmatpush.msra.mxu0 %v356
    %1196 = vmatpush.msra.mxu0 %v352
    %1197 = vmatpush.msra.mxu0 %v348
    %1198 = vmatpush.msra.mxu0 %v344
    %1199 = vmatpush.msra.mxu0 %v340
    %1200 = vmatpush.msra.mxu0 %v336
    %1201 = vmatpush.msra.mxu0 %v332
    %1202 = vmatpush.msra.mxu0 %v328
    %1203 = vmatpush.msra.mxu0 %v324
    %1204 = vmatpush.msra.mxu0 %v320
    %1205 = vmatmul.f32.gmra.mxu0 %v1181
    %v1206 = vpop.f32.mrf.mxu0
    %v1207 = vadd.f32 0.0, %v1206
    %1208 = vdwg.mxu0
    %1209 = vmatpush.msra.mxu0 %v381
    %1210 = vmatpush.msra.mxu0 %v377
    %1211 = vmatpush.msra.mxu0 %v373
    %1212 = vmatpush.msra.mxu0 %v369
    %1213 = vmatpush.msra.mxu0 %v365
    %1214 = vmatpush.msra.mxu0 %v361
    %1215 = vmatpush.msra.mxu0 %v357
    %1216 = vmatpush.msra.mxu0 %v353
    %1217 = vmatpush.msra.mxu0 %v349
    %1218 = vmatpush.msra.mxu0 %v345
    %1219 = vmatpush.msra.mxu0 %v341
    %1220 = vmatpush.msra.mxu0 %v337
    %1221 = vmatpush.msra.mxu0 %v333
    %1222 = vmatpush.msra.mxu0 %v329
    %1223 = vmatpush.msra.mxu0 %v325
    %1224 = vmatpush.msra.mxu0 %v321
    %1225 = vmatmul.f32.gmra.mxu0 %v1181
    %v1226 = vpop.f32.mrf.mxu0
    %v1227 = vadd.f32 0.0, %v1226
    %1228 = vdwg.mxu0
    %1229 = vmatpush.msra.mxu0 %v382
    %1230 = vmatpush.msra.mxu0 %v378
    %1231 = vmatpush.msra.mxu0 %v374
    %1232 = vmatpush.msra.mxu0 %v370
    %1233 = vmatpush.msra.mxu0 %v366
    %1234 = vmatpush.msra.mxu0 %v362
    %1235 = vmatpush.msra.mxu0 %v358
    %1236 = vmatpush.msra.mxu0 %v354
    %1237 = vmatpush.msra.mxu0 %v350
    %1238 = vmatpush.msra.mxu0 %v346
    %1239 = vmatpush.msra.mxu0 %v342
    %1240 = vmatpush.msra.mxu0 %v338
    %1241 = vmatpush.msra.mxu0 %v334
    %1242 = vmatpush.msra.mxu0 %v330
    %1243 = vmatpush.msra.mxu0 %v326
    %1244 = vmatpush.msra.mxu0 %v322
    %1245 = vmatmul.f32.gmra.mxu0 %v1181
    %v1246 = vpop.f32.mrf.mxu0
    %v1247 = vadd.f32 0.0, %v1246
    %1248 = vdwg.mxu0
    %1249 = vmatpush.msra.mxu0 %v383
    %1250 = vmatpush.msra.mxu0 %v379
    %1251 = vmatpush.msra.mxu0 %v375
    %1252 = vmatpush.msra.mxu0 %v371
    %1253 = vmatpush.msra.mxu0 %v367
    %1254 = vmatpush.msra.mxu0 %v363
    %1255 = vmatpush.msra.mxu0 %v359
    %1256 = vmatpush.msra.mxu0 %v355
    %1257 = vmatpush.msra.mxu0 %v351
    %1258 = vmatpush.msra.mxu0 %v347
    %1259 = vmatpush.msra.mxu0 %v343
    %1260 = vmatpush.msra.mxu0 %v339
    %1261 = vmatpush.msra.mxu0 %v335
    %1262 = vmatpush.msra.mxu0 %v331
    %1263 = vmatpush.msra.mxu0 %v327
    %1264 = vmatpush.msra.mxu0 %v323
    %1265 = vmatmul.f32.gmra.mxu0 %v1181
    %v1266 = vpop.f32.mrf.mxu0
    %v1267 = vadd.f32 0.0, %v1266
    %1268 = vdwg.mxu0
    %v1269 = vadd.f32 %v1185, %v1207
    %v1270 = vadd.f32 %v1186, %v1227
    %v1271 = vadd.f32 %v1187, %v1247
    %v1272 = vadd.f32 %v1188, %v1267
    %v1273 = vxor.u32 %v1269, 2147483648
    %v1274 = vmul.f32 %v1273, 1.442695
    %v1275 = vpow.pop %v1274
    %v1276 = vadd.f32 %v1275, 1.0
    %v1277 = vrcp.pop %v1276
    %v1278 = vmul.f32 %v1276, %v1277
    %v1279 = vsub.f32 1.0, %v1278
    %v1280 = vmul.f32 %v1277, %v1279
    %v1281 = vadd.f32 %v1277, %v1280
    %vm1282 = vweird.f32 %v1276
    %vm1283 = vweird.f32 %v1277
    %vm1284 = vmor %vm1282, %vm1283
    %v1285 = vsel %vm1284, %v1277, %v1281
    %v1286 = vand.u32 2147483647, %v1276
    %vm1287 = vcmp.eq.f32.partialorder %v1286, 8.507059e+37
    %v1288 = vand.u32 %v1276, 2147483648
    %v1289 = vor.u32 1.1754944e-38, %v1288
    %v1290 = vsel %vm1287, %v1289, %v1285
    %v1291 = vmul.f32 1.0, %v1290
    %v1292 = vxor.u32 %v1270, 2147483648
    %v1293 = vmul.f32 %v1292, 1.442695
    %v1294 = vpow.pop %v1293
    %v1295 = vadd.f32 %v1294, 1.0
    %v1296 = vrcp.pop %v1295
    %v1297 = vmul.f32 %v1295, %v1296
    %v1298 = vsub.f32 1.0, %v1297
    %v1299 = vmul.f32 %v1296, %v1298
    %v1300 = vadd.f32 %v1296, %v1299
    %vm1301 = vweird.f32 %v1295
    %vm1302 = vweird.f32 %v1296
    %vm1303 = vmor %vm1301, %vm1302
    %v1304 = vsel %vm1303, %v1296, %v1300
    %v1305 = vand.u32 2147483647, %v1295
    %vm1306 = vcmp.eq.f32.partialorder %v1305, 8.507059e+37
    %v1307 = vand.u32 %v1295, 2147483648
    %v1308 = vor.u32 1.1754944e-38, %v1307
    %v1309 = vsel %vm1306, %v1308, %v1304
    %v1310 = vmul.f32 1.0, %v1309
    %v1311 = vtanh.pop %v1271
    %v1312 = vxor.u32 %v1272, 2147483648
    %v1313 = vmul.f32 %v1312, 1.442695
    %v1314 = vpow.pop %v1313
    %v1315 = vadd.f32 %v1314, 1.0
    %v1316 = vrcp.pop %v1315
    %v1317 = vmul.f32 %v1315, %v1316
    %v1318 = vsub.f32 1.0, %v1317
    %v1319 = vmul.f32 %v1316, %v1318
    %v1320 = vadd.f32 %v1316, %v1319
    %vm1321 = vweird.f32 %v1315
    %vm1322 = vweird.f32 %v1316
    %vm1323 = vmor %vm1321, %vm1322
    %v1324 = vsel %vm1323, %v1316, %v1320
    %v1325 = vand.u32 2147483647, %v1315
    %vm1326 = vcmp.eq.f32.partialorder %v1325, 8.507059e+37
    %v1327 = vand.u32 %v1315, 2147483648
    %v1328 = vor.u32 1.1754944e-38, %v1327
    %v1329 = vsel %vm1326, %v1328, %v1324
    %v1330 = vmul.f32 1.0, %v1329
    %v1331 = vmul.f32 %v1310, %v1172
    %v1332 = vmul.f32 %v1291, %v1311
    %v1333 = vadd.f32 %v1331, %v1332
    %v1334 = vtanh.pop %v1333
    %v1335 = vmul.f32 %v1330, %v1334
    %vm1336 = vcmp.gt.s32.totalorder %v312, 5
    %v1337 = vsel %vm1336, 1, 0
    %1338 = vset.pattern.permute.xlu0 0
    %1339 = vperm.xlu0 %1338, %v1337
    %v1340 = vpop.permute.xlu0 %1339
    %vm1341 = vcmp.eq.s32.totalorder %v1340, 1
    %v1342 = vsel %vm1341, %v1335, %v1181
    %1343 = vst [vmem:[#allocation9] sm:$0xff] %v1342
    // Predicated region
    $region34: #{tpu_custom_call.1} parent=1 // pred_check
      _
    $region35: #{tpu_custom_call.1} parent=1 // pred_check_branch
      %1345 = sbr.rel (0) target = $region37
    $region36: #{tpu_custom_call.1} parent=1 // pred_region
      %1347 = vsyncadd [#allocation5], 0
      %s1349 = sshll.u32 [#allocation9], 4
      %s1350 = int_to_ptr.vmem [resolvable:$true] %s1349
      %s1351 = sshll.u32 %s5, 4
      %s1352 = int_to_ptr.hbm [resolvable:$true] %s1351
      %1354 = dma.vmem_to_hbm [thread:$0]  %s1350, 128, %s1352, [#allocation5]
    $region37: #{tpu_custom_call.1} parent=1 // pred_fallthru
      _
    // Predicated region
    $region38: #{tpu_custom_call.1} parent=1 // pred_check
      _
    $region39: #{tpu_custom_call.1} parent=1 // pred_check_branch
      %1356 = sbr.rel (0) target = $region41
    $region40: #{tpu_custom_call.1} parent=1 // pred_region
      %1358 = dma.done [#allocation5], 128
    $region41: #{tpu_custom_call.1} parent=1 // pred_fallthru
      _
    %1359 = vsyncpa [#allocation4], 1
    %1360 = vsyncpa [#allocation7], 1
    %1361 = vsyncpa [#allocation5], 1

</llo_original>
